<compile_context>
chip_gen: v5e
topology: v5e:2x2
jax: 0.10.0
libtpu: 0.0.40
codegen_flags: <defaults>
</compile_context>

<pallas_src>
import jax
import jax.numpy as jnp
from jax import lax
from jax.experimental import pallas as pl
from jax.experimental.pallas import tpu as pltpu

_NEG = -1e30  # finite masked-softmax sentinel (no NaN on empty/padded spans)


# ---------------------------------------------------------------------------
# Fused kernel: gathers + head-attn pooling + fused MLP + arc/rel biaffines.
#   rows 0..3n-1 of the masked softmax are one-hot gathers (lo==hi),
#   rows 3n..4n-1 are the EDU-span attention-pooling rows.
# ---------------------------------------------------------------------------
def _fused_biaffine_kernel(tok_ref, lo_ref, hi_ref,
                           w1_ref, b1_ref, w2_ref, b2_ref,
                           wmlp_ref, bmlp_ref,
                           wa_ref, aflat_ref,
                           arc_out_ref, rel_out_ref):
    f32 = jnp.float32
    T, D = tok_ref.shape
    n = arc_out_ref.shape[0]
    n4 = lo_ref.shape[0]                     # 4 * n
    arc_dim = wa_ref.shape[0]                # mlp_arc_dim
    rel_aug = aflat_ref.shape[0]             # mlp_rel_dim + 1
    n_rel = rel_out_ref.shape[0]
    contract_last = (((1,), (1,)), ((), ()))

    tv = tok_ref[...]                                                     # (T, D)

    # Token attention logits (Linear+ReLU+Linear), produced directly as (1, T)
    # so no in-kernel transpose is needed.
    h = jnp.maximum(
        jnp.dot(tv, w1_ref[...], preferred_element_type=f32) + b1_ref[...], 0.0)
    attn_row = lax.dot_general(w2_ref[...], h, (((0,), (1,)), ((), ())),
                               preferred_element_type=f32) + b2_ref[...]  # (1, T)

    # Unified masked softmax: one-hot rows get weight exactly 1 on their token,
    # span rows get the head-attention distribution.
    tok_ids = lax.broadcasted_iota(jnp.int32, (n4, T), 1)
    mask = (lo_ref[...] <= tok_ids) & (tok_ids <= hi_ref[...])            # (4n, T)
    scores = jnp.where(mask, attn_row, _NEG)                              # bcast (1,T)
    m = jnp.max(scores, axis=1, keepdims=True)
    p = jnp.exp(scores - m)
    p = p * pl.reciprocal(jnp.sum(p, axis=1, keepdims=True), approx=True)
    # One MXU push for all gathers + pooling: rows = [start; end; head; ha].
    g = jnp.dot(p, tv, preferred_element_type=f32)                        # (4n, D)

    # Fused 4-way MLP.  The (n, 4D) feature concat is folded into a block-sum
    # over the four D-row slabs of the fused weight (no scratch, no copies).
    pre = jnp.zeros((n, wmlp_ref.shape[1]), f32)
    for k in range(4):                                                    # static unroll
        pre += jnp.dot(g[k * n:(k + 1) * n, :],
                       wmlp_ref[k * D:(k + 1) * D, :],
                       preferred_element_type=f32)
    act = jnp.maximum(pre + bmlp_ref[...], 0.0)
    # Fused-MLP output columns: [h_arc | d_arc, 1 | h_rel, 1 | d_rel, 1]
    # (the "1" columns come from the zero-weight/bias-1 trick).
    c1 = arc_dim
    c2 = 2 * arc_dim + 1
    c3 = c2 + rel_aug
    h_arc = act[:, :arc_dim]                                              # (n, arc)
    d_arc_aug = act[:, c1:c2]                                             # (n, arc+1)
    h_rel_aug = act[:, c2:c3]                                             # (n, rel+1)
    d_rel_aug = act[:, c3:c3 + rel_aug]                                   # (n, rel+1)

    # Arc biaffine (bias_x=False, bias_y=True): h W [d;1]^T
    tmp = jnp.dot(h_arc, wa_ref[...], preferred_element_type=f32)         # (n, arc+1)
    arc_out_ref[...] = lax.dot_general(tmp, d_arc_aug, contract_last,
                                       preferred_element_type=f32)        # (n, n)

    # Rel biaffine (bias_x=True, bias_y=True): [h;1] A_r [d;1]^T for all r.
    t_all = jnp.dot(h_rel_aug, aflat_ref[...],
                    preferred_element_type=f32)                           # (n, R*(rel+1))
    parts = []
    for r in range(n_rel):                                                # small, unrolled
        blk = t_all[:, r * rel_aug:(r + 1) * rel_aug]                     # (n, rel+1)
        parts.append(lax.dot_general(blk, d_rel_aug, contract_last,
                                     preferred_element_type=f32)[None])   # (1, n, n)
    rel_out_ref[...] = jnp.concatenate(parts, axis=0)                     # one (R,n,n) store


# ---------------------------------------------------------------------------
# Param-load-time preparation (hoisted out of the per-forward path).
# ---------------------------------------------------------------------------
def prepare_params(p):
    rel_dim = p["wrh"].shape[1]
    n_rel = p["w_rel"].shape[0]
    edu_dim = p["wah"].shape[0]
    zero_col = jnp.zeros((edu_dim, 1), jnp.float32)
    one_bias = jnp.ones((1, 1), jnp.float32)
    # Fused MLP producing [h_arc | d_arc, 1 | h_rel, 1 | d_rel, 1] in one matmul.
    w_mlp = jnp.concatenate([p["wah"], p["wad"], zero_col,
                             p["wrh"], zero_col,
                             p["wrd"], zero_col], axis=1)
    b_mlp = jnp.concatenate([p["bah"], p["bad"], one_bias,
                             p["brh"], one_bias,
                             p["brd"], one_bias], axis=1)
    w_arc_full = p["w_arc"][0]                                            # (arc, arc+1)
    a_flat = jnp.transpose(p["w_rel"], (1, 0, 2)).reshape(
        rel_dim + 1, n_rel * (rel_dim + 1))                               # (rel+1, R*(rel+1))
    return dict(w1=p["w1"], b1=p["b1"], w2=p["w2"], b2=p["b2"],
                w_mlp=w_mlp, b_mlp=b_mlp, w_arc=w_arc_full, a_flat=a_flat,
                n_rel=jnp.int32(n_rel))


# ---------------------------------------------------------------------------
# Full post-BERT forward: one pallas_call.
# ---------------------------------------------------------------------------
def biaffine_model_forward(token_vectors, begin, end, head, prep):
    n = begin.shape[0]
    rel_aug = prep["a_flat"].shape[0]
    n_rel = prep["a_flat"].shape[1] // rel_aug
    begin = begin.astype(jnp.int32)
    end = end.astype(jnp.int32)
    head = head.astype(jnp.int32)
    # [lo, hi] ranges: first 3n rows are singleton ranges (row gathers),
    # last n rows are the EDU spans (attention pooling).
    lo = jnp.concatenate([begin, end, head, begin])[:, None]
    hi = jnp.concatenate([begin, end, head, end])[:, None]

    vm = pl.BlockSpec(memory_space=pltpu.MemorySpace.VMEM)
    arc, rel = pl.pallas_call(
        _fused_biaffine_kernel,
        out_shape=(jax.ShapeDtypeStruct((n, n), jnp.float32),
                   jax.ShapeDtypeStruct((n_rel, n, n), jnp.float32)),
        in_specs=[vm] * 11,
        out_specs=(vm, vm),
    )(token_vectors, lo, hi,
      prep["w1"], prep["b1"], prep["w2"], prep["b2"],
      prep["w_mlp"], prep["b_mlp"],
      prep["w_arc"], prep["a_flat"])
    # Match PyTorch: permute(0,2,3,1).squeeze(0) -> (n_edus, n_edus, n_relations)
    return arc, jnp.transpose(rel, (1, 2, 0))


# Pure-JAX reference matching the PyTorch semantics (for validation).
def reference_forward(token_vectors, begin, end, head, p):
    start_v, end_v, head_v = (token_vectors[begin], token_vectors[end],
                              token_vectors[head])
    attn = jnp.maximum(token_vectors @ p["w1"] + p["b1"], 0.0) @ p["w2"] + p["b2"]
    attn = attn[:, 0]
    rng = jnp.arange(token_vectors.shape[0])
    mask = (begin[:, None] <= rng[None, :]) & (rng[None, :] <= end[:, None])
    scores = jnp.log(mask.astype(jnp.float32)) + attn[None, :]
    pr = jax.nn.softmax(scores, axis=1)
    ha = pr @ token_vectors
    e = jnp.concatenate([start_v, end_v, head_v, ha], axis=1)
    relu = lambda x: jnp.maximum(x, 0.0)
    h_arc = relu(e @ p["wah"] + p["bah"])
    d_arc = relu(e @ p["wad"] + p["bad"])
    h_rel = relu(e @ p["wrh"] + p["brh"])
    d_rel = relu(e @ p["wrd"] + p["brd"])
    ones = jnp.ones((e.shape[0], 1), jnp.float32)
    d_arc_aug = jnp.concatenate([d_arc, ones], 1)
    arc = jnp.einsum("xi,ij,yj->xy", h_arc, p["w_arc"][0], d_arc_aug)
    h_rel_aug = jnp.concatenate([h_rel, ones], 1)
    d_rel_aug = jnp.concatenate([d_rel, ones], 1)
    rel = jnp.einsum("xi,oij,yj->xyo", h_rel_aug, p["w_rel"], d_rel_aug)
    return arc, rel


if __name__ == "__main__":
    # Small synthetic config (flags: use_edu_head_information=True,
    # use_edu_head_attn=True).
    T, D = 40, 64              # n_tokens, bert hidden size
    n_edus = 8
    attn_dim = 32              # mlp_edu_head_attn_dim
    arc_dim = 128              # mlp_arc_dim
    rel_dim = 64               # mlp_rel_dim
    n_relations = 6
    edu_dim = 4 * D            # start + end + head + head-attn

    key = jax.random.PRNGKey(0)
    ks = jax.random.split(key, 16)
    init = lambda k, shape, s=0.1: (s * jax.random.normal(k, shape)).astype(jnp.float32)

    token_vectors = init(ks[0], (T, D), 1.0)
    params = dict(
        w1=init(ks[1], (D, attn_dim)),   b1=init(ks[2], (1, attn_dim)),
        w2=init(ks[3], (attn_dim, 1)),   b2=init(ks[4], (1, 1)),
        wah=init(ks[5], (edu_dim, arc_dim)), bah=init(ks[6], (1, arc_dim)),
        wad=init(ks[7], (edu_dim, arc_dim)), bad=init(ks[8], (1, arc_dim)),
        wrh=init(ks[9], (edu_dim, rel_dim)), brh=init(ks[10], (1, rel_dim)),
        wrd=init(ks[11], (edu_dim, rel_dim)), brd=init(ks[12], (1, rel_dim)),
        w_arc=init(ks[13], (1, arc_dim, arc_dim + 1)),               # bias_x=F, bias_y=T
        w_rel=init(ks[14], (n_relations, rel_dim + 1, rel_dim + 1)), # bias_x=T, bias_y=T
    )

    # EDU spans over the token sequence (edu 0 is <root>).
    begin = jnp.array([0, 1, 7, 13, 19, 25, 31, 36], jnp.int32)
    end = jnp.array([0, 6, 12, 18, 24, 30, 35, 39], jnp.int32)
    head = jnp.minimum(begin + 1, end)

    prep = prepare_params(params)                         # once, at param load
    fwd = jax.jit(biaffine_model_forward)

    arc_scores, rel_logits = fwd(token_vectors, begin, end, head, prep)
    jax.block_until_ready((arc_scores, rel_logits))

    assert arc_scores.shape == (n_edus, n_edus)
    assert rel_logits.shape == (n_edus, n_edus, n_relations)

    arc_ref, rel_ref = reference_forward(token_vectors, begin, end, head, params)
    assert jnp.allclose(arc_scores, arc_ref, rtol=2e-2, atol=2e-2)
    assert jnp.allclose(rel_logits, rel_ref, rtol=2e-2, atol=2e-2)

    print("KERNEL_OK")
</pallas_src>

<mosaic_0001>
module attributes {stable_mosaic.version = 11 : i64} {
  func.func @_fused_biaffine_kernel(%arg0: memref<40x64xf32, #tpu.memory_space<vmem>>, %arg1: memref<32x1xi32, #tpu.memory_space<vmem>>, %arg2: memref<32x1xi32, #tpu.memory_space<vmem>>, %arg3: memref<64x32xf32, #tpu.memory_space<vmem>>, %arg4: memref<1x32xf32, #tpu.memory_space<vmem>>, %arg5: memref<32x1xf32, #tpu.memory_space<vmem>>, %arg6: memref<1x1xf32, #tpu.memory_space<vmem>>, %arg7: memref<256x387xf32, #tpu.memory_space<vmem>>, %arg8: memref<1x387xf32, #tpu.memory_space<vmem>>, %arg9: memref<128x129xf32, #tpu.memory_space<vmem>>, %arg10: memref<65x390xf32, #tpu.memory_space<vmem>>, %arg11: memref<8x8xf32, #tpu.memory_space<vmem>>, %arg12: memref<6x8x8xf32, #tpu.memory_space<vmem>>) attributes {dimension_semantics = [], scalar_prefetch = 0 : i64, scratch_operands = 0 : i64, tpu.core_type = #tpu.core_type<tc>} {
    %c0 = arith.constant 0 : index
    %c0_0 = arith.constant 0 : index
    %0 = vector.load %arg0[%c0, %c0_0] : memref<40x64xf32, #tpu.memory_space<vmem>>, vector<40x64xf32>
    %c0_1 = arith.constant 0 : index
    %c0_2 = arith.constant 0 : index
    %1 = vector.load %arg3[%c0_1, %c0_2] : memref<64x32xf32, #tpu.memory_space<vmem>>, vector<64x32xf32>
    %cst = arith.constant dense<0.000000e+00> : vector<40x32xf32>
    %2 = tpu.matmul %0, %1, %cst {dimension_numbers = #tpu.dot_dimension_numbers<[1], [0], [0], [1], [0, 0, 1, 1], [], []>} : vector<40x64xf32>, vector<64x32xf32>, vector<40x32xf32> -> vector<40x32xf32>
    %c0_3 = arith.constant 0 : index
    %c0_4 = arith.constant 0 : index
    %3 = vector.load %arg4[%c0_3, %c0_4] : memref<1x32xf32, #tpu.memory_space<vmem>>, vector<1x32xf32>
    %4 = vector.broadcast %3 : vector<1x32xf32> to vector<40x32xf32>
    %5 = arith.addf %2, %4 : vector<40x32xf32>
    %cst_5 = arith.constant 0.000000e+00 : f32
    %6 = vector.broadcast %cst_5 : f32 to vector<40x32xf32>
    %7 = arith.maximumf %5, %6 : vector<40x32xf32>
    %c0_6 = arith.constant 0 : index
    %c0_7 = arith.constant 0 : index
    %8 = vector.load %arg5[%c0_6, %c0_7] : memref<32x1xf32, #tpu.memory_space<vmem>>, vector<32x1xf32>
    %cst_8 = arith.constant dense<0.000000e+00> : vector<1x40xf32>
    %9 = tpu.matmul %8, %7, %cst_8 {dimension_numbers = #tpu.dot_dimension_numbers<[0], [1], [1], [0], [0, 1, 1, 0], [], []>} : vector<32x1xf32>, vector<40x32xf32>, vector<1x40xf32> -> vector<1x40xf32>
    %c0_9 = arith.constant 0 : index
    %c0_10 = arith.constant 0 : index
    %10 = vector.load %arg6[%c0_9, %c0_10] : memref<1x1xf32, #tpu.memory_space<vmem>>, vector<1x1xf32>
    %11 = vector.broadcast %10 : vector<1x1xf32> to vector<1x40xf32>
    %12 = arith.addf %9, %11 : vector<1x40xf32>
    %13 = tpu.iota {dimensions = array<i32: 1>} : vector<32x40xi32>
    %c0_11 = arith.constant 0 : index
    %c0_12 = arith.constant 0 : index
    %14 = vector.load %arg1[%c0_11, %c0_12] : memref<32x1xi32, #tpu.memory_space<vmem>>, vector<32x1xi32>
    %15 = vector.broadcast %14 : vector<32x1xi32> to vector<32x40xi32>
    %16 = arith.cmpi sle, %15, %13 : vector<32x40xi32>
    %c0_13 = arith.constant 0 : index
    %c0_14 = arith.constant 0 : index
    %17 = vector.load %arg2[%c0_13, %c0_14] : memref<32x1xi32, #tpu.memory_space<vmem>>, vector<32x1xi32>
    %18 = vector.broadcast %17 : vector<32x1xi32> to vector<32x40xi32>
    %19 = arith.cmpi sle, %13, %18 : vector<32x40xi32>
    %20 = arith.andi %16, %19 : vector<32x40xi1>
    %cst_15 = arith.constant -1.000000e+30 : f32
    %21 = vector.shape_cast %12 : vector<1x40xf32> to vector<1x40xf32>
    %22 = vector.broadcast %21 : vector<1x40xf32> to vector<32x40xf32>
    %23 = vector.broadcast %cst_15 : f32 to vector<32x40xf32>
    %24 = arith.select %20, %22, %23 : vector<32x40xi1>, vector<32x40xf32>
    %cst_16 = arith.constant dense<0xFF800000> : vector<32xf32>
    %25 = vector.multi_reduction <maximumf>, %24, %cst_16 [1] : vector<32x40xf32> to vector<32xf32>
    %26 = vector.shape_cast %25 : vector<32xf32> to vector<32x1xf32>
    %27 = vector.broadcast %26 : vector<32x1xf32> to vector<32x40xf32>
    %28 = arith.subf %24, %27 : vector<32x40xf32>
    %29 = math.exp %28 : vector<32x40xf32>
    %cst_17 = arith.constant dense<0.000000e+00> : vector<32xf32>
    %30 = vector.multi_reduction <add>, %29, %cst_17 [1] : vector<32x40xf32> to vector<32xf32>
    %31 = vector.shape_cast %30 : vector<32xf32> to vector<32x1xf32>
    %32 = tpu.reciprocal %31 {approx = true} : vector<32x1xf32> -> vector<32x1xf32>
    %33 = vector.broadcast %32 : vector<32x1xf32> to vector<32x40xf32>
    %34 = arith.mulf %29, %33 : vector<32x40xf32>
    %cst_18 = arith.constant dense<0.000000e+00> : vector<32x64xf32>
    %35 = tpu.matmul %34, %0, %cst_18 {dimension_numbers = #tpu.dot_dimension_numbers<[1], [0], [0], [1], [0, 0, 1, 1], [], []>} : vector<32x40xf32>, vector<40x64xf32>, vector<32x64xf32> -> vector<32x64xf32>
    %cst_19 = arith.constant 0.000000e+00 : f32
    %36 = vector.broadcast %cst_19 : f32 to vector<8x387xf32>
    %37 = vector.extract_strided_slice %35 {offsets = [0, 0], sizes = [8, 64], strides = [1, 1]} : vector<32x64xf32> to vector<8x64xf32>
    %c0_20 = arith.constant 0 : index
    %c0_21 = arith.constant 0 : index
    %38 = vector.load %arg7[%c0_20, %c0_21] : memref<256x387xf32, #tpu.memory_space<vmem>>, vector<64x387xf32>
    %cst_22 = arith.constant dense<0.000000e+00> : vector<8x387xf32>
    %39 = tpu.matmul %37, %38, %cst_22 {dimension_numbers = #tpu.dot_dimension_numbers<[1], [0], [0], [1], [0, 0, 1, 1], [], []>} : vector<8x64xf32>, vector<64x387xf32>, vector<8x387xf32> -> vector<8x387xf32>
    %40 = arith.addf %36, %39 : vector<8x387xf32>
    %41 = vector.extract_strided_slice %35 {offsets = [8, 0], sizes = [8, 64], strides = [1, 1]} : vector<32x64xf32> to vector<8x64xf32>
    %c64 = arith.constant 64 : index
    %c0_23 = arith.constant 0 : index
    %42 = vector.load %arg7[%c64, %c0_23] : memref<256x387xf32, #tpu.memory_space<vmem>>, vector<64x387xf32>
    %cst_24 = arith.constant dense<0.000000e+00> : vector<8x387xf32>
    %43 = tpu.matmul %41, %42, %cst_24 {dimension_numbers = #tpu.dot_dimension_numbers<[1], [0], [0], [1], [0, 0, 1, 1], [], []>} : vector<8x64xf32>, vector<64x387xf32>, vector<8x387xf32> -> vector<8x387xf32>
    %44 = arith.addf %40, %43 : vector<8x387xf32>
    %45 = vector.extract_strided_slice %35 {offsets = [16, 0], sizes = [8, 64], strides = [1, 1]} : vector<32x64xf32> to vector<8x64xf32>
    %c128 = arith.constant 128 : index
    %c0_25 = arith.constant 0 : index
    %46 = vector.load %arg7[%c128, %c0_25] : memref<256x387xf32, #tpu.memory_space<vmem>>, vector<64x387xf32>
    %cst_26 = arith.constant dense<0.000000e+00> : vector<8x387xf32>
    %47 = tpu.matmul %45, %46, %cst_26 {dimension_numbers = #tpu.dot_dimension_numbers<[1], [0], [0], [1], [0, 0, 1, 1], [], []>} : vector<8x64xf32>, vector<64x387xf32>, vector<8x387xf32> -> vector<8x387xf32>
    %48 = arith.addf %44, %47 : vector<8x387xf32>
    %49 = vector.extract_strided_slice %35 {offsets = [24, 0], sizes = [8, 64], strides = [1, 1]} : vector<32x64xf32> to vector<8x64xf32>
    %c192 = arith.constant 192 : index
    %c0_27 = arith.constant 0 : index
    %50 = vector.load %arg7[%c192, %c0_27] : memref<256x387xf32, #tpu.memory_space<vmem>>, vector<64x387xf32>
    %cst_28 = arith.constant dense<0.000000e+00> : vector<8x387xf32>
    %51 = tpu.matmul %49, %50, %cst_28 {dimension_numbers = #tpu.dot_dimension_numbers<[1], [0], [0], [1], [0, 0, 1, 1], [], []>} : vector<8x64xf32>, vector<64x387xf32>, vector<8x387xf32> -> vector<8x387xf32>
    %52 = arith.addf %48, %51 : vector<8x387xf32>
    %c0_29 = arith.constant 0 : index
    %c0_30 = arith.constant 0 : index
    %53 = vector.load %arg8[%c0_29, %c0_30] : memref<1x387xf32, #tpu.memory_space<vmem>>, vector<1x387xf32>
    %54 = vector.broadcast %53 : vector<1x387xf32> to vector<8x387xf32>
    %55 = arith.addf %52, %54 : vector<8x387xf32>
    %cst_31 = arith.constant 0.000000e+00 : f32
    %56 = vector.broadcast %cst_31 : f32 to vector<8x387xf32>
    %57 = arith.maximumf %55, %56 : vector<8x387xf32>
    %58 = vector.extract_strided_slice %57 {offsets = [0, 0], sizes = [8, 128], strides = [1, 1]} : vector<8x387xf32> to vector<8x128xf32>
    %59 = vector.extract_strided_slice %57 {offsets = [0, 128], sizes = [8, 129], strides = [1, 1]} : vector<8x387xf32> to vector<8x129xf32>
    %60 = vector.extract_strided_slice %57 {offsets = [0, 257], sizes = [8, 65], strides = [1, 1]} : vector<8x387xf32> to vector<8x65xf32>
    %61 = vector.extract_strided_slice %57 {offsets = [0, 322], sizes = [8, 65], strides = [1, 1]} : vector<8x387xf32> to vector<8x65xf32>
    %c0_32 = arith.constant 0 : index
    %c0_33 = arith.constant 0 : index
    %62 = vector.load %arg9[%c0_32, %c0_33] : memref<128x129xf32, #tpu.memory_space<vmem>>, vector<128x129xf32>
    %cst_34 = arith.constant dense<0.000000e+00> : vector<8x129xf32>
    %63 = tpu.matmul %58, %62, %cst_34 {dimension_numbers = #tpu.dot_dimension_numbers<[1], [0], [0], [1], [0, 0, 1, 1], [], []>} : vector<8x128xf32>, vector<128x129xf32>, vector<8x129xf32> -> vector<8x129xf32>
    %cst_35 = arith.constant dense<0.000000e+00> : vector<8x8xf32>
    %64 = tpu.matmul %63, %59, %cst_35 {dimension_numbers = #tpu.dot_dimension_numbers<[1], [1], [0], [0], [0, 0, 1, 0], [], []>} : vector<8x129xf32>, vector<8x129xf32>, vector<8x8xf32> -> vector<8x8xf32>
    %c0_36 = arith.constant 0 : index
    %c0_37 = arith.constant 0 : index
    %65 = vector.load %arg11[%c0_36, %c0_37] : memref<8x8xf32, #tpu.memory_space<vmem>>, vector<8x8xf32>
    tpu.vector_store %arg11[%c0_36, %c0_37], %64 {strides = array<i32>} : memref<8x8xf32, #tpu.memory_space<vmem>>, vector<8x8xf32>,
    %c0_38 = arith.constant 0 : index
    %c0_39 = arith.constant 0 : index
    %66 = vector.load %arg10[%c0_38, %c0_39] : memref<65x390xf32, #tpu.memory_space<vmem>>, vector<65x390xf32>
    %cst_40 = arith.constant dense<0.000000e+00> : vector<8x390xf32>
    %67 = tpu.matmul %60, %66, %cst_40 {dimension_numbers = #tpu.dot_dimension_numbers<[1], [0], [0], [1], [0, 0, 1, 1], [], []>} : vector<8x65xf32>, vector<65x390xf32>, vector<8x390xf32> -> vector<8x390xf32>
    %68 = vector.extract_strided_slice %67 {offsets = [0, 0], sizes = [8, 65], strides = [1, 1]} : vector<8x390xf32> to vector<8x65xf32>
    %cst_41 = arith.constant dense<0.000000e+00> : vector<8x8xf32>
    %69 = tpu.matmul %68, %61, %cst_41 {dimension_numbers = #tpu.dot_dimension_numbers<[1], [1], [0], [0], [0, 0, 1, 0], [], []>} : vector<8x65xf32>, vector<8x65xf32>, vector<8x8xf32> -> vector<8x8xf32>
    %70 = vector.shape_cast %69 : vector<8x8xf32> to vector<1x8x8xf32>
    %71 = vector.extract_strided_slice %67 {offsets = [0, 65], sizes = [8, 65], strides = [1, 1]} : vector<8x390xf32> to vector<8x65xf32>
    %cst_42 = arith.constant dense<0.000000e+00> : vector<8x8xf32>
    %72 = tpu.matmul %71, %61, %cst_42 {dimension_numbers = #tpu.dot_dimension_numbers<[1], [1], [0], [0], [0, 0, 1, 0], [], []>} : vector<8x65xf32>, vector<8x65xf32>, vector<8x8xf32> -> vector<8x8xf32>
    %73 = vector.shape_cast %72 : vector<8x8xf32> to vector<1x8x8xf32>
    %74 = vector.extract_strided_slice %67 {offsets = [0, 130], sizes = [8, 65], strides = [1, 1]} : vector<8x390xf32> to vector<8x65xf32>
    %cst_43 = arith.constant dense<0.000000e+00> : vector<8x8xf32>
    %75 = tpu.matmul %74, %61, %cst_43 {dimension_numbers = #tpu.dot_dimension_numbers<[1], [1], [0], [0], [0, 0, 1, 0], [], []>} : vector<8x65xf32>, vector<8x65xf32>, vector<8x8xf32> -> vector<8x8xf32>
    %76 = vector.shape_cast %75 : vector<8x8xf32> to vector<1x8x8xf32>
    %77 = vector.extract_strided_slice %67 {offsets = [0, 195], sizes = [8, 65], strides = [1, 1]} : vector<8x390xf32> to vector<8x65xf32>
    %cst_44 = arith.constant dense<0.000000e+00> : vector<8x8xf32>
    %78 = tpu.matmul %77, %61, %cst_44 {dimension_numbers = #tpu.dot_dimension_numbers<[1], [1], [0], [0], [0, 0, 1, 0], [], []>} : vector<8x65xf32>, vector<8x65xf32>, vector<8x8xf32> -> vector<8x8xf32>
    %79 = vector.shape_cast %78 : vector<8x8xf32> to vector<1x8x8xf32>
    %80 = vector.extract_strided_slice %67 {offsets = [0, 260], sizes = [8, 65], strides = [1, 1]} : vector<8x390xf32> to vector<8x65xf32>
    %cst_45 = arith.constant dense<0.000000e+00> : vector<8x8xf32>
    %81 = tpu.matmul %80, %61, %cst_45 {dimension_numbers = #tpu.dot_dimension_numbers<[1], [1], [0], [0], [0, 0, 1, 0], [], []>} : vector<8x65xf32>, vector<8x65xf32>, vector<8x8xf32> -> vector<8x8xf32>
    %82 = vector.shape_cast %81 : vector<8x8xf32> to vector<1x8x8xf32>
    %83 = vector.extract_strided_slice %67 {offsets = [0, 325], sizes = [8, 65], strides = [1, 1]} : vector<8x390xf32> to vector<8x65xf32>
    %cst_46 = arith.constant dense<0.000000e+00> : vector<8x8xf32>
    %84 = tpu.matmul %83, %61, %cst_46 {dimension_numbers = #tpu.dot_dimension_numbers<[1], [1], [0], [0], [0, 0, 1, 0], [], []>} : vector<8x65xf32>, vector<8x65xf32>, vector<8x8xf32> -> vector<8x8xf32>
    %85 = vector.shape_cast %84 : vector<8x8xf32> to vector<1x8x8xf32>
    %86 = tpu.concatenate %70, %73, %76, %79, %82, %85 in 0 : vector<1x8x8xf32>, vector<1x8x8xf32>, vector<1x8x8xf32>, vector<1x8x8xf32>, vector<1x8x8xf32>, vector<1x8x8xf32> -> vector<6x8x8xf32>
    %c0_47 = arith.constant 0 : index
    %c0_48 = arith.constant 0 : index
    %c0_49 = arith.constant 0 : index
    %87 = vector.load %arg12[%c0_47, %c0_48, %c0_49] : memref<6x8x8xf32, #tpu.memory_space<vmem>>, vector<6x8x8xf32>
    tpu.vector_store %arg12[%c0_47, %c0_48, %c0_49], %86 {strides = array<i32>} : memref<6x8x8xf32, #tpu.memory_space<vmem>>, vector<6x8x8xf32>,
    return
  }
}

</mosaic_0001>

<llo_original>
// kernel: biaffine_model_forward.1
$region0: #{biaffine_model_forward.1}
  #allocation0 [shape = 'u32[]', space=smem, size = 0x4, offset = 0x4, fixed_abs, tag = 'smem constant byte address 0x4 - core index']
  #allocation1 [shape = 'u32[72,128]{1,0:T(1,128)}', space=vmem, size = 0x9000, scoped, tag = 'internal scratch']
  #allocation2 [shape = 'f32[1,1]{1,0:T(1,128)S(1)}', space=vmem, size = 0x200, scoped, tag = 'scoped memory for biaffine_model_forward.1']
  %s0 = inlined_call_operand.vmem [shape: f32[40,64], index: 0, kind: input, shape index: {}]
  %s1 = inlined_call_operand.vmem [shape: s32[32,1], index: 1, kind: input, shape index: {}]
  %s2 = inlined_call_operand.vmem [shape: s32[32,1], index: 2, kind: input, shape index: {}]
  %s3 = inlined_call_operand.vmem [shape: f32[64,32], index: 3, kind: input, shape index: {}]
  %s4 = inlined_call_operand.vmem [shape: f32[1,32], index: 4, kind: input, shape index: {}]
  %s5 = inlined_call_operand.vmem [shape: f32[32,1], index: 5, kind: input, shape index: {}]
  %s6 = inlined_call_operand.<no memory space> [shape: f32[1,1], index: 6, kind: input, shape index: {}]
  %s7 = inlined_call_operand.vmem [shape: f32[256,387], index: 7, kind: input, shape index: {}]
  %s8 = inlined_call_operand.vmem [shape: f32[1,387], index: 8, kind: input, shape index: {}]
  %s9 = inlined_call_operand.vmem [shape: f32[128,129], index: 9, kind: input, shape index: {}]
  %s10 = inlined_call_operand.vmem [shape: f32[65,390], index: 10, kind: input, shape index: {}]
  %s11 = inlined_call_operand.hbm [shape: f32[8,8], index: 11, kind: output, shape index: {0}]
  %s12 = inlined_call_operand.hbm [shape: f32[6,8,8], index: 12, kind: output, shape index: {1}]
  %13 = xla_tuple %s11, %s12
  %s14 = sld [smem:[#allocation0]]
  $region62: #{biaffine_model_forward.1} parent=0
    _
  %s16 = ssub.s32 1, %s14
  %s17 = scalar_select 0, %s16, %s14
  %v18 = vstv %s6
  %19 = vst [vmem:[#allocation2] sm:$0x1] %v18
  $region1: #{biaffine_model_forward.1} parent=0
    #allocation3 [shape = 'u8[4096]{0}', space=vmem, size = 0x1000, scoped, tag = 'output window, operand 0, single buffered']
    #allocation4 [shape = 's32[1]{0}', space=sflag, size = 0x4, scoped, tag = 'scoped memory for biaffine_model_forward.1']
    #allocation5 [shape = 'u8[24576]{0}', space=vmem, size = 0x6000, scoped, tag = 'output window, operand 1, single buffered']
    #allocation6 [shape = 's32[1]{0}', space=sflag, size = 0x4, scoped, tag = 'scoped memory for biaffine_model_forward.1']
    %20 = vsyncpa [#allocation4], 0
    %21 = vsyncpa [#allocation6], 0
    // Predicated region
    $region2: #{biaffine_model_forward.1} parent=1 // pred_check
      _
    $region3: #{biaffine_model_forward.1} parent=1 // pred_check_branch
      %23 = sbr.rel (0) target = $region5
    $region4: #{biaffine_model_forward.1} parent=1 // pred_region
      _
    $region5: #{biaffine_model_forward.1} parent=1 // pred_fallthru
      _
    // Predicated region
    $region6: #{biaffine_model_forward.1} parent=1 // pred_check
      _
    $region7: #{biaffine_model_forward.1} parent=1 // pred_check_branch
      %25 = sbr.rel (0) target = $region9
    $region8: #{biaffine_model_forward.1} parent=1 // pred_region
      _
    $region9: #{biaffine_model_forward.1} parent=1 // pred_fallthru
      _
    // Predicated region
    $region10: #{biaffine_model_forward.1} parent=1 // pred_check
      _
    $region11: #{biaffine_model_forward.1} parent=1 // pred_check_branch
      %27 = sbr.rel (0) target = $region13
    $region12: #{biaffine_model_forward.1} parent=1 // pred_region
      _
    $region13: #{biaffine_model_forward.1} parent=1 // pred_fallthru
      _
    // Predicated region
    $region14: #{biaffine_model_forward.1} parent=1 // pred_check
      _
    $region15: #{biaffine_model_forward.1} parent=1 // pred_check_branch
      %29 = sbr.rel (0) target = $region17
    $region16: #{biaffine_model_forward.1} parent=1 // pred_region
      _
    $region17: #{biaffine_model_forward.1} parent=1 // pred_fallthru
      _
    // Predicated region
    $region18: #{biaffine_model_forward.1} parent=1 // pred_check
      _
    $region19: #{biaffine_model_forward.1} parent=1 // pred_check_branch
      %31 = sbr.rel (0) target = $region21
    $region20: #{biaffine_model_forward.1} parent=1 // pred_region
      _
    $region21: #{biaffine_model_forward.1} parent=1 // pred_fallthru
      _
    // Predicated region
    $region22: #{biaffine_model_forward.1} parent=1 // pred_check
      _
    $region23: #{biaffine_model_forward.1} parent=1 // pred_check_branch
      %33 = sbr.rel (0) target = $region25
    $region24: #{biaffine_model_forward.1} parent=1 // pred_region
      _
    $region25: #{biaffine_model_forward.1} parent=1 // pred_fallthru
      _
    // Predicated region
    $region26: #{biaffine_model_forward.1} parent=1 // pred_check
      _
    $region27: #{biaffine_model_forward.1} parent=1 // pred_check_branch
      %35 = sbr.rel (0) target = $region29
    $region28: #{biaffine_model_forward.1} parent=1 // pred_region
      _
    $region29: #{biaffine_model_forward.1} parent=1 // pred_fallthru
      _
    // Predicated region
    $region30: #{biaffine_model_forward.1} parent=1 // pred_check
      _
    $region31: #{biaffine_model_forward.1} parent=1 // pred_check_branch
      %37 = sbr.rel (0) target = $region33
    $region32: #{biaffine_model_forward.1} parent=1 // pred_region
      _
    $region33: #{biaffine_model_forward.1} parent=1 // pred_fallthru
      _
    // Predicated region
    $region34: #{biaffine_model_forward.1} parent=1 // pred_check
      _
    $region35: #{biaffine_model_forward.1} parent=1 // pred_check_branch
      %39 = sbr.rel (0) target = $region37
    $region36: #{biaffine_model_forward.1} parent=1 // pred_region
      _
    $region37: #{biaffine_model_forward.1} parent=1 // pred_fallthru
      _
    // Predicated region
    $region38: #{biaffine_model_forward.1} parent=1 // pred_check
      _
    $region39: #{biaffine_model_forward.1} parent=1 // pred_check_branch
      %41 = sbr.rel (0) target = $region41
    $region40: #{biaffine_model_forward.1} parent=1 // pred_region
      _
    $region41: #{biaffine_model_forward.1} parent=1 // pred_fallthru
      _
    // Predicated region
    $region42: #{biaffine_model_forward.1} parent=1 // pred_check
      _
    $region43: #{biaffine_model_forward.1} parent=1 // pred_check_branch
      %43 = sbr.rel (0) target = $region45
    $region44: #{biaffine_model_forward.1} parent=1 // pred_region
      _
    $region45: #{biaffine_model_forward.1} parent=1 // pred_fallthru
      _
    %v44 = vld [vmem:[%s0] sm:$0xff]
    %v45 = vld [vmem:[%s0 + $0x8] sm:$0xff]
    %v46 = vld [vmem:[%s0 + $0x10] sm:$0xff]
    %v47 = vld [vmem:[%s0 + $0x18] sm:$0xff]
    %v48 = vld [vmem:[%s0 + $0x20] sm:$0xff]
    %v49 = vld [vmem:[%s3] sm:$0xff]
    %v50 = vld [vmem:[%s3 + $0x8] sm:$0xff]
    %v51 = vld [vmem:[%s3 + $0x10] sm:$0xff]
    %v52 = vld [vmem:[%s3 + $0x18] sm:$0xff]
    %v53 = vld [vmem:[%s3 + $0x20] sm:$0xff]
    %v54 = vld [vmem:[%s3 + $0x28] sm:$0xff]
    %v55 = vld [vmem:[%s3 + $0x30] sm:$0xff]
    %v56 = vld [vmem:[%s3 + $0x38] sm:$0xff]
    %v57 = vld [vmem:[%s4] sm:$0x1]
    %v59 = vperm.slane %v57, 0
    %vm61 = vcmask 523264
    %v63 = vsel %vm61, %v44, 0
    %v66 = vsel %vm61, %v45, 0
    %v69 = vsel %vm61, %v46, 0
    %v72 = vsel %vm61, %v47, 0
    %v75 = vsel %vm61, %v48, 0
    %77 = vmatpush.msra.mxu0 0.0
    %78 = vmatpush.msra.mxu0 0.0
    %79 = vmatpush.msra.mxu0 0.0
    %80 = vmatpush.msra.mxu0 0.0
    %81 = vmatpush.msra.mxu0 0.0
    %82 = vmatpush.msra.mxu0 0.0
    %83 = vmatpush.msra.mxu0 0.0
    %84 = vmatpush.msra.mxu0 0.0
    %85 = vmatpush.msra.mxu0 %v56
    %86 = vmatpush.msra.mxu0 %v55
    %87 = vmatpush.msra.mxu0 %v54
    %88 = vmatpush.msra.mxu0 %v53
    %89 = vmatpush.msra.mxu0 %v52
    %90 = vmatpush.msra.mxu0 %v51
    %91 = vmatpush.msra.mxu0 %v50
    %92 = vmatpush.msra.mxu0 %v49
    %93 = vmatmul.f32.gmra.mxu0 %v63
    %v94 = vpop.f32.mrf.mxu0
    %v95 = vadd.f32 %v59, %v94
    %96 = vmatmul.f32.gmra.mxu0 %v66
    %v97 = vpop.f32.mrf.mxu0
    %v98 = vadd.f32 %v59, %v97
    %99 = vmatmul.f32.gmra.mxu0 %v69
    %v100 = vpop.f32.mrf.mxu0
    %v101 = vadd.f32 %v59, %v100
    %102 = vmatmul.f32.gmra.mxu0 %v72
    %v103 = vpop.f32.mrf.mxu0
    %v104 = vadd.f32 %v59, %v103
    %105 = vmatmul.f32.gmra.mxu0 %v75
    %v106 = vpop.f32.mrf.mxu0
    %v107 = vadd.f32 %v59, %v106
    %108 = vdwg.mxu0
    %v109 = vmax.f32 %v95, 0.0
    %v110 = vmax.f32 %v98, 0.0
    %v111 = vmax.f32 %v101, 0.0
    %v112 = vmax.f32 %v104, 0.0
    %v113 = vmax.f32 %v107, 0.0
    %v114 = vld [vmem:[%s5] sm:$0xff]
    %v115 = vld [vmem:[%s5 + $0x8] sm:$0xff]
    %v116 = vld [vmem:[%s5 + $0x10] sm:$0xff]
    %v117 = vld [vmem:[%s5 + $0x18] sm:$0xff]
    %v118 = vld [vmem:[#allocation2] sm:$0x1]
    %120 = vset.pattern.permute.xlu0 0
    %121 = vperm.xlu0 %120, %v118
    %v122 = vpop.permute.xlu0 %121
    %v124 = vperm.slane %v122, 0
    %125 = vxpose.xlu0.b32.start [1/16] %v114, 128
    %126 = vxpose.xlu0.b32.cont [2/16] %v115, 128
    %127 = vxpose.xlu0.b32.cont [3/16] %v116, 128
    %128 = vxpose.xlu0.b32.cont [4/16] %v117, 128
    %129 = vxpose.xlu0.b32.cont [5/16] 0.0, 128
    %130 = vxpose.xlu0.b32.cont [6/16] 0.0, 128
    %131 = vxpose.xlu0.b32.cont [7/16] 0.0, 128
    %132 = vxpose.xlu0.b32.cont [8/16] 0.0, 128
    %133 = vxpose.xlu0.b32.cont [9/16] 0.0, 128
    %134 = vxpose.xlu0.b32.cont [10/16] 0.0, 128
    %135 = vxpose.xlu0.b32.cont [11/16] 0.0, 128
    %136 = vxpose.xlu0.b32.cont [12/16] 0.0, 128
    %137 = vxpose.xlu0.b32.cont [13/16] 0.0, 128
    %138 = vxpose.xlu0.b32.cont [14/16] 0.0, 128
    %139 = vxpose.xlu0.b32.cont [15/16] 0.0, 128
    %140 = vxpose.xlu0.b32.end [16/16] 0.0, 128
    %v141 = vpop.trf.xlu0
    %v142 = vpop.trf.xlu0
    %v143 = vpop.trf.xlu0
    %v144 = vpop.trf.xlu0
    %v145 = vpop.trf.xlu0
    %v146 = vpop.trf.xlu0
    %v147 = vpop.trf.xlu0
    %v148 = vpop.trf.xlu0
    %v149 = vpop.trf.xlu0
    %v150 = vpop.trf.xlu0
    %v151 = vpop.trf.xlu0
    %v152 = vpop.trf.xlu0
    %v153 = vpop.trf.xlu0
    %v154 = vpop.trf.xlu0
    %v155 = vpop.trf.xlu0
    %v156 = vpop.trf.xlu0
    %vm157 = vcmask 261120
    %v159 = vsel %vm157, %v141, 0
    %v162 = vsel %vm157, %v109, 0
    %v165 = vsel %vm157, %v110, 0
    %v168 = vsel %vm157, %v111, 0
    %v171 = vsel %vm157, %v112, 0
    %v174 = vsel %vm157, %v113, 0
    %176 = vmatpush.xpose.msra.mxu0 0.0
    %177 = vmatpush.xpose.msra.mxu0 0.0
    %178 = vmatpush.xpose.msra.mxu0 0.0
    %179 = vmatpush.xpose.msra.mxu0 0.0
    %180 = vmatpush.xpose.msra.mxu0 0.0
    %181 = vmatpush.xpose.msra.mxu0 0.0
    %182 = vmatpush.xpose.msra.mxu0 0.0
    %183 = vmatpush.xpose.msra.mxu0 0.0
    %184 = vmatpush.xpose.msra.mxu0 0.0
    %185 = vmatpush.xpose.msra.mxu0 0.0
    %186 = vmatpush.xpose.msra.mxu0 0.0
    %187 = vmatpush.xpose.msra.mxu0 %v174
    %188 = vmatpush.xpose.msra.mxu0 %v171
    %189 = vmatpush.xpose.msra.mxu0 %v168
    %190 = vmatpush.xpose.msra.mxu0 %v165
    %191 = vmatpush.xpose.msra.mxu0 %v162
    %192 = vmatmul.f32.gmra.mxu0 %v159
    %v193 = vpop.f32.mrf.mxu0
    %v194 = vadd.f32 %v124, %v193
    %195 = vdwg.mxu0
    %v196 = vlaneseq
    %v197 = vand.u32 %v196, 127
    %v198 = vld [vmem:[%s1] sm:$0xff]
    %v199 = vld [vmem:[%s1 + $0x8] sm:$0xff]
    %v200 = vld [vmem:[%s1 + $0x10] sm:$0xff]
    %v201 = vld [vmem:[%s1 + $0x18] sm:$0xff]
    %202 = vset.pattern.permute.xlu0 0
    %203 = vperm.xlu0 %202, %v198
    %v204 = vpop.permute.xlu0 %203
    %205 = vset.pattern.permute.xlu0 0
    %206 = vperm.xlu0 %205, %v199
    %v207 = vpop.permute.xlu0 %206
    %208 = vset.pattern.permute.xlu0 0
    %209 = vperm.xlu0 %208, %v200
    %v210 = vpop.permute.xlu0 %209
    %211 = vset.pattern.permute.xlu0 0
    %212 = vperm.xlu0 %211, %v201
    %v213 = vpop.permute.xlu0 %212
    %vm214 = vcmp.le.s32.totalorder %v204, %v197
    %vm215 = vcmp.le.s32.totalorder %v207, %v197
    %vm216 = vcmp.le.s32.totalorder %v210, %v197
    %vm217 = vcmp.le.s32.totalorder %v213, %v197
    %v218 = vld [vmem:[%s2] sm:$0xff]
    %v219 = vld [vmem:[%s2 + $0x8] sm:$0xff]
    %v220 = vld [vmem:[%s2 + $0x10] sm:$0xff]
    %v221 = vld [vmem:[%s2 + $0x18] sm:$0xff]
    %222 = vset.pattern.permute.xlu0 0
    %223 = vperm.xlu0 %222, %v218
    %v224 = vpop.permute.xlu0 %223
    %225 = vset.pattern.permute.xlu0 0
    %226 = vperm.xlu0 %225, %v219
    %v227 = vpop.permute.xlu0 %226
    %228 = vset.pattern.permute.xlu0 0
    %229 = vperm.xlu0 %228, %v220
    %v230 = vpop.permute.xlu0 %229
    %231 = vset.pattern.permute.xlu0 0
    %232 = vperm.xlu0 %231, %v221
    %v233 = vpop.permute.xlu0 %232
    %vm234 = vcmp.le.s32.totalorder %v197, %v224
    %vm235 = vcmp.le.s32.totalorder %v197, %v227
    %vm236 = vcmp.le.s32.totalorder %v197, %v230
    %vm237 = vcmp.le.s32.totalorder %v197, %v233
    %vm238 = vmand %vm214, %vm234
    %vm239 = vmand %vm215, %vm235
    %vm240 = vmand %vm216, %vm236
    %vm241 = vmand %vm217, %vm237
    %v242 = vperm.slane %v194, 0
    %v243 = vsel %vm238, %v242, -1e+30
    %v244 = vsel %vm239, %v242, -1e+30
    %v245 = vsel %vm240, %v242, -1e+30
    %v246 = vsel %vm241, %v242, -1e+30
    %vm247 = vcmask 326656
    %v248 = vsel %vm247, %v243, -inf
    %249 = vmax.xlane.f32.xlu0 %v248
    %v250 = vpop.xlane.xlu0 %249
    %v251 = vsel %vm247, %v244, -inf
    %252 = vmax.xlane.f32.xlu0 %v251
    %v253 = vpop.xlane.xlu0 %252
    %v254 = vsel %vm247, %v245, -inf
    %255 = vmax.xlane.f32.xlu0 %v254
    %v256 = vpop.xlane.xlu0 %255
    %v257 = vsel %vm247, %v246, -inf
    %258 = vmax.xlane.f32.xlu0 %v257
    %v259 = vpop.xlane.xlu0 %258
    %v260 = vsub.f32 %v243, %v250
    %v261 = vsub.f32 %v244, %v253
    %v262 = vsub.f32 %v245, %v256
    %v263 = vsub.f32 %v246, %v259
    %v264 = vmul.f32 %v260, 1.442695
    %v265 = vpow.pop %v264
    %v266 = vmul.f32 %v261, 1.442695
    %v267 = vpow.pop %v266
    %v268 = vmul.f32 %v262, 1.442695
    %v269 = vpow.pop %v268
    %v270 = vmul.f32 %v263, 1.442695
    %v271 = vpow.pop %v270
    %v272 = vsel %vm247, %v265, 0.0
    %273 = vadd.xlane.f32.xlu0 %v272
    %v274 = vpop.xlane.xlu0 %273
    %v275 = vsel %vm247, %v267, 0.0
    %276 = vadd.xlane.f32.xlu0 %v275
    %v277 = vpop.xlane.xlu0 %276
    %v278 = vsel %vm247, %v269, 0.0
    %279 = vadd.xlane.f32.xlu0 %v278
    %v280 = vpop.xlane.xlu0 %279
    %v281 = vsel %vm247, %v271, 0.0
    %282 = vadd.xlane.f32.xlu0 %v281
    %v283 = vpop.xlane.xlu0 %282
    %v284 = vrcp.pop %v274
    %v285 = vrcp.pop %v277
    %v286 = vrcp.pop %v280
    %v287 = vrcp.pop %v283
    %v288 = vmul.f32 %v265, %v284
    %v289 = vmul.f32 %v267, %v285
    %v290 = vmul.f32 %v269, %v286
    %v291 = vmul.f32 %v271, %v287
    %v293 = vsel %vm247, %v288, 0
    %v296 = vsel %vm247, %v289, 0
    %v299 = vsel %vm247, %v290, 0
    %v302 = vsel %vm247, %v291, 0
    %304 = vmatpush.msra.mxu0 0.0
    %305 = vmatpush.msra.mxu0 0.0
    %306 = vmatpush.msra.mxu0 0.0
    %307 = vmatpush.msra.mxu0 0.0
    %308 = vmatpush.msra.mxu0 0.0
    %309 = vmatpush.msra.mxu0 0.0
    %310 = vmatpush.msra.mxu0 0.0
    %311 = vmatpush.msra.mxu0 0.0
    %312 = vmatpush.msra.mxu0 0.0
    %313 = vmatpush.msra.mxu0 0.0
    %314 = vmatpush.msra.mxu0 0.0
    %315 = vmatpush.msra.mxu0 %v48
    %316 = vmatpush.msra.mxu0 %v47
    %317 = vmatpush.msra.mxu0 %v46
    %318 = vmatpush.msra.mxu0 %v45
    %319 = vmatpush.msra.mxu0 %v44
    %320 = vmatmul.f32.gmra.mxu0 %v293
    %v321 = vpop.f32.mrf.mxu0
    %v322 = vadd.f32 0.0, %v321
    %323 = vmatmul.f32.gmra.mxu0 %v296
    %v324 = vpop.f32.mrf.mxu0
    %v325 = vadd.f32 0.0, %v324
    %326 = vmatmul.f32.gmra.mxu0 %v299
    %v327 = vpop.f32.mrf.mxu0
    %v328 = vadd.f32 0.0, %v327
    %329 = vmatmul.f32.gmra.mxu0 %v302
    %v330 = vpop.f32.mrf.mxu0
    %v331 = vadd.f32 0.0, %v330
    %332 = vdwg.mxu0
    %v333 = vld [vmem:[%s7] sm:$0xff]
    %v334 = vld [vmem:[%s7 + $0x8] sm:$0xff]
    %v335 = vld [vmem:[%s7 + $0x10] sm:$0xff]
    %v336 = vld [vmem:[%s7 + $0x18] sm:$0xff]
    %v337 = vld [vmem:[%s7 + $0x20] sm:$0xff]
    %v338 = vld [vmem:[%s7 + $0x28] sm:$0xff]
    %v339 = vld [vmem:[%s7 + $0x30] sm:$0xff]
    %v340 = vld [vmem:[%s7 + $0x38] sm:$0xff]
    %v341 = vld [vmem:[%s7 + $0x40] sm:$0xff]
    %v342 = vld [vmem:[%s7 + $0x48] sm:$0xff]
    %v343 = vld [vmem:[%s7 + $0x50] sm:$0xff]
    %v344 = vld [vmem:[%s7 + $0x58] sm:$0xff]
    %v345 = vld [vmem:[%s7 + $0x60] sm:$0xff]
    %v346 = vld [vmem:[%s7 + $0x68] sm:$0xff]
    %v347 = vld [vmem:[%s7 + $0x70] sm:$0xff]
    %v348 = vld [vmem:[%s7 + $0x78] sm:$0xff]
    %v349 = vld [vmem:[%s7 + $0x80] sm:$0xff]
    %v350 = vld [vmem:[%s7 + $0x88] sm:$0xff]
    %v351 = vld [vmem:[%s7 + $0x90] sm:$0xff]
    %v352 = vld [vmem:[%s7 + $0x98] sm:$0xff]
    %v353 = vld [vmem:[%s7 + $0xa0] sm:$0xff]
    %v354 = vld [vmem:[%s7 + $0xa8] sm:$0xff]
    %v355 = vld [vmem:[%s7 + $0xb0] sm:$0xff]
    %v356 = vld [vmem:[%s7 + $0xb8] sm:$0xff]
    %v357 = vld [vmem:[%s7 + $0xc0] sm:$0xff]
    %v358 = vld [vmem:[%s7 + $0xc8] sm:$0xff]
    %v359 = vld [vmem:[%s7 + $0xd0] sm:$0xff]
    %v360 = vld [vmem:[%s7 + $0xd8] sm:$0xff]
    %v361 = vld [vmem:[%s7 + $0xe0] sm:$0xff]
    %v362 = vld [vmem:[%s7 + $0xe8] sm:$0xff]
    %v363 = vld [vmem:[%s7 + $0xf0] sm:$0xff]
    %v364 = vld [vmem:[%s7 + $0xf8] sm:$0xff]
    %v365 = vld [vmem:[%s7 + $0x100] sm:$0xff]
    %v366 = vld [vmem:[%s7 + $0x108] sm:$0xff]
    %v367 = vld [vmem:[%s7 + $0x110] sm:$0xff]
    %v368 = vld [vmem:[%s7 + $0x118] sm:$0xff]
    %v369 = vld [vmem:[%s7 + $0x120] sm:$0xff]
    %v370 = vld [vmem:[%s7 + $0x128] sm:$0xff]
    %v371 = vld [vmem:[%s7 + $0x130] sm:$0xff]
    %v372 = vld [vmem:[%s7 + $0x138] sm:$0xff]
    %v373 = vld [vmem:[%s7 + $0x140] sm:$0xff]
    %v374 = vld [vmem:[%s7 + $0x148] sm:$0xff]
    %v375 = vld [vmem:[%s7 + $0x150] sm:$0xff]
    %v376 = vld [vmem:[%s7 + $0x158] sm:$0xff]
    %v377 = vld [vmem:[%s7 + $0x160] sm:$0xff]
    %v378 = vld [vmem:[%s7 + $0x168] sm:$0xff]
    %v379 = vld [vmem:[%s7 + $0x170] sm:$0xff]
    %v380 = vld [vmem:[%s7 + $0x178] sm:$0xff]
    %v381 = vld [vmem:[%s7 + $0x180] sm:$0xff]
    %v382 = vld [vmem:[%s7 + $0x188] sm:$0xff]
    %v383 = vld [vmem:[%s7 + $0x190] sm:$0xff]
    %v384 = vld [vmem:[%s7 + $0x198] sm:$0xff]
    %v385 = vld [vmem:[%s7 + $0x1a0] sm:$0xff]
    %v386 = vld [vmem:[%s7 + $0x1a8] sm:$0xff]
    %v387 = vld [vmem:[%s7 + $0x1b0] sm:$0xff]
    %v388 = vld [vmem:[%s7 + $0x1b8] sm:$0xff]
    %v389 = vld [vmem:[%s7 + $0x1c0] sm:$0xff]
    %v390 = vld [vmem:[%s7 + $0x1c8] sm:$0xff]
    %v391 = vld [vmem:[%s7 + $0x1d0] sm:$0xff]
    %v392 = vld [vmem:[%s7 + $0x1d8] sm:$0xff]
    %v393 = vld [vmem:[%s7 + $0x1e0] sm:$0xff]
    %v394 = vld [vmem:[%s7 + $0x1e8] sm:$0xff]
    %v395 = vld [vmem:[%s7 + $0x1f0] sm:$0xff]
    %v396 = vld [vmem:[%s7 + $0x1f8] sm:$0xff]
    %v398 = vsel %vm61, %v325, 0
    %400 = vmatpush.msra.mxu0 0.0
    %401 = vmatpush.msra.mxu0 0.0
    %402 = vmatpush.msra.mxu0 0.0
    %403 = vmatpush.msra.mxu0 0.0
    %404 = vmatpush.msra.mxu0 0.0
    %405 = vmatpush.msra.mxu0 0.0
    %406 = vmatpush.msra.mxu0 0.0
    %407 = vmatpush.msra.mxu0 0.0
    %408 = vmatpush.msra.mxu0 %v393
    %409 = vmatpush.msra.mxu0 %v389
    %410 = vmatpush.msra.mxu0 %v385
    %411 = vmatpush.msra.mxu0 %v381
    %412 = vmatpush.msra.mxu0 %v377
    %413 = vmatpush.msra.mxu0 %v373
    %414 = vmatpush.msra.mxu0 %v369
    %415 = vmatpush.msra.mxu0 %v365
    %416 = vmatmul.f32.gmra.mxu0 %v398
    %v417 = vpop.f32.mrf.mxu0
    %v418 = vadd.f32 0.0, %v417
    %419 = vdwg.mxu0
    %420 = vmatpush.msra.mxu0 0.0
    %421 = vmatpush.msra.mxu0 0.0
    %422 = vmatpush.msra.mxu0 0.0
    %423 = vmatpush.msra.mxu0 0.0
    %424 = vmatpush.msra.mxu0 0.0
    %425 = vmatpush.msra.mxu0 0.0
    %426 = vmatpush.msra.mxu0 0.0
    %427 = vmatpush.msra.mxu0 0.0
    %428 = vmatpush.msra.mxu0 %v394
    %429 = vmatpush.msra.mxu0 %v390
    %430 = vmatpush.msra.mxu0 %v386
    %431 = vmatpush.msra.mxu0 %v382
    %432 = vmatpush.msra.mxu0 %v378
    %433 = vmatpush.msra.mxu0 %v374
    %434 = vmatpush.msra.mxu0 %v370
    %435 = vmatpush.msra.mxu0 %v366
    %436 = vmatmul.f32.gmra.mxu0 %v398
    %v437 = vpop.f32.mrf.mxu0
    %v438 = vadd.f32 0.0, %v437
    %439 = vdwg.mxu0
    %440 = vmatpush.msra.mxu0 0.0
    %441 = vmatpush.msra.mxu0 0.0
    %442 = vmatpush.msra.mxu0 0.0
    %443 = vmatpush.msra.mxu0 0.0
    %444 = vmatpush.msra.mxu0 0.0
    %445 = vmatpush.msra.mxu0 0.0
    %446 = vmatpush.msra.mxu0 0.0
    %447 = vmatpush.msra.mxu0 0.0
    %448 = vmatpush.msra.mxu0 %v395
    %449 = vmatpush.msra.mxu0 %v391
    %450 = vmatpush.msra.mxu0 %v387
    %451 = vmatpush.msra.mxu0 %v383
    %452 = vmatpush.msra.mxu0 %v379
    %453 = vmatpush.msra.mxu0 %v375
    %454 = vmatpush.msra.mxu0 %v371
    %455 = vmatpush.msra.mxu0 %v367
    %456 = vmatmul.f32.gmra.mxu0 %v398
    %v457 = vpop.f32.mrf.mxu0
    %v458 = vadd.f32 0.0, %v457
    %459 = vdwg.mxu0
    %460 = vmatpush.msra.mxu0 0.0
    %461 = vmatpush.msra.mxu0 0.0
    %462 = vmatpush.msra.mxu0 0.0
    %463 = vmatpush.msra.mxu0 0.0
    %464 = vmatpush.msra.mxu0 0.0
    %465 = vmatpush.msra.mxu0 0.0
    %466 = vmatpush.msra.mxu0 0.0
    %467 = vmatpush.msra.mxu0 0.0
    %468 = vmatpush.msra.mxu0 %v396
    %469 = vmatpush.msra.mxu0 %v392
    %470 = vmatpush.msra.mxu0 %v388
    %471 = vmatpush.msra.mxu0 %v384
    %472 = vmatpush.msra.mxu0 %v380
    %473 = vmatpush.msra.mxu0 %v376
    %474 = vmatpush.msra.mxu0 %v372
    %475 = vmatpush.msra.mxu0 %v368
    %476 = vmatmul.f32.gmra.mxu0 %v398
    %v477 = vpop.f32.mrf.mxu0
    %v478 = vadd.f32 0.0, %v477
    %479 = vdwg.mxu0
    %v481 = vsel %vm61, %v322, 0
    %483 = vmatpush.msra.mxu0 0.0
    %484 = vmatpush.msra.mxu0 0.0
    %485 = vmatpush.msra.mxu0 0.0
    %486 = vmatpush.msra.mxu0 0.0
    %487 = vmatpush.msra.mxu0 0.0
    %488 = vmatpush.msra.mxu0 0.0
    %489 = vmatpush.msra.mxu0 0.0
    %490 = vmatpush.msra.mxu0 0.0
    %491 = vmatpush.msra.mxu0 %v361
    %492 = vmatpush.msra.mxu0 %v357
    %493 = vmatpush.msra.mxu0 %v353
    %494 = vmatpush.msra.mxu0 %v349
    %495 = vmatpush.msra.mxu0 %v345
    %496 = vmatpush.msra.mxu0 %v341
    %497 = vmatpush.msra.mxu0 %v337
    %498 = vmatpush.msra.mxu0 %v333
    %499 = vmatmul.f32.gmra.mxu0 %v481
    %v500 = vpop.f32.mrf.mxu0
    %v501 = vadd.f32 %v418, %v500
    %502 = vdwg.mxu0
    %503 = vmatpush.msra.mxu0 0.0
    %504 = vmatpush.msra.mxu0 0.0
    %505 = vmatpush.msra.mxu0 0.0
    %506 = vmatpush.msra.mxu0 0.0
    %507 = vmatpush.msra.mxu0 0.0
    %508 = vmatpush.msra.mxu0 0.0
    %509 = vmatpush.msra.mxu0 0.0
    %510 = vmatpush.msra.mxu0 0.0
    %511 = vmatpush.msra.mxu0 %v362
    %512 = vmatpush.msra.mxu0 %v358
    %513 = vmatpush.msra.mxu0 %v354
    %514 = vmatpush.msra.mxu0 %v350
    %515 = vmatpush.msra.mxu0 %v346
    %516 = vmatpush.msra.mxu0 %v342
    %517 = vmatpush.msra.mxu0 %v338
    %518 = vmatpush.msra.mxu0 %v334
    %519 = vmatmul.f32.gmra.mxu0 %v481
    %v520 = vpop.f32.mrf.mxu0
    %v521 = vadd.f32 %v438, %v520
    %522 = vdwg.mxu0
    %523 = vmatpush.msra.mxu0 0.0
    %524 = vmatpush.msra.mxu0 0.0
    %525 = vmatpush.msra.mxu0 0.0
    %526 = vmatpush.msra.mxu0 0.0
    %527 = vmatpush.msra.mxu0 0.0
    %528 = vmatpush.msra.mxu0 0.0
    %529 = vmatpush.msra.mxu0 0.0
    %530 = vmatpush.msra.mxu0 0.0
    %531 = vmatpush.msra.mxu0 %v363
    %532 = vmatpush.msra.mxu0 %v359
    %533 = vmatpush.msra.mxu0 %v355
    %534 = vmatpush.msra.mxu0 %v351
    %535 = vmatpush.msra.mxu0 %v347
    %536 = vmatpush.msra.mxu0 %v343
    %537 = vmatpush.msra.mxu0 %v339
    %538 = vmatpush.msra.mxu0 %v335
    %539 = vmatmul.f32.gmra.mxu0 %v481
    %v540 = vpop.f32.mrf.mxu0
    %v541 = vadd.f32 %v458, %v540
    %542 = vdwg.mxu0
    %543 = vmatpush.msra.mxu0 0.0
    %544 = vmatpush.msra.mxu0 0.0
    %545 = vmatpush.msra.mxu0 0.0
    %546 = vmatpush.msra.mxu0 0.0
    %547 = vmatpush.msra.mxu0 0.0
    %548 = vmatpush.msra.mxu0 0.0
    %549 = vmatpush.msra.mxu0 0.0
    %550 = vmatpush.msra.mxu0 0.0
    %551 = vmatpush.msra.mxu0 %v364
    %552 = vmatpush.msra.mxu0 %v360
    %553 = vmatpush.msra.mxu0 %v356
    %554 = vmatpush.msra.mxu0 %v352
    %555 = vmatpush.msra.mxu0 %v348
    %556 = vmatpush.msra.mxu0 %v344
    %557 = vmatpush.msra.mxu0 %v340
    %558 = vmatpush.msra.mxu0 %v336
    %559 = vmatmul.f32.gmra.mxu0 %v481
    %v560 = vpop.f32.mrf.mxu0
    %v561 = vadd.f32 %v478, %v560
    %562 = vdwg.mxu0
    %v563 = vld [vmem:[%s7 + $0x200] sm:$0xff]
    %v564 = vld [vmem:[%s7 + $0x208] sm:$0xff]
    %v565 = vld [vmem:[%s7 + $0x210] sm:$0xff]
    %v566 = vld [vmem:[%s7 + $0x218] sm:$0xff]
    %v567 = vld [vmem:[%s7 + $0x220] sm:$0xff]
    %v568 = vld [vmem:[%s7 + $0x228] sm:$0xff]
    %v569 = vld [vmem:[%s7 + $0x230] sm:$0xff]
    %v570 = vld [vmem:[%s7 + $0x238] sm:$0xff]
    %v571 = vld [vmem:[%s7 + $0x240] sm:$0xff]
    %v572 = vld [vmem:[%s7 + $0x248] sm:$0xff]
    %v573 = vld [vmem:[%s7 + $0x250] sm:$0xff]
    %v574 = vld [vmem:[%s7 + $0x258] sm:$0xff]
    %v575 = vld [vmem:[%s7 + $0x260] sm:$0xff]
    %v576 = vld [vmem:[%s7 + $0x268] sm:$0xff]
    %v577 = vld [vmem:[%s7 + $0x270] sm:$0xff]
    %v578 = vld [vmem:[%s7 + $0x278] sm:$0xff]
    %v579 = vld [vmem:[%s7 + $0x280] sm:$0xff]
    %v580 = vld [vmem:[%s7 + $0x288] sm:$0xff]
    %v581 = vld [vmem:[%s7 + $0x290] sm:$0xff]
    %v582 = vld [vmem:[%s7 + $0x298] sm:$0xff]
    %v583 = vld [vmem:[%s7 + $0x2a0] sm:$0xff]
    %v584 = vld [vmem:[%s7 + $0x2a8] sm:$0xff]
    %v585 = vld [vmem:[%s7 + $0x2b0] sm:$0xff]
    %v586 = vld [vmem:[%s7 + $0x2b8] sm:$0xff]
    %v587 = vld [vmem:[%s7 + $0x2c0] sm:$0xff]
    %v588 = vld [vmem:[%s7 + $0x2c8] sm:$0xff]
    %v589 = vld [vmem:[%s7 + $0x2d0] sm:$0xff]
    %v590 = vld [vmem:[%s7 + $0x2d8] sm:$0xff]
    %v591 = vld [vmem:[%s7 + $0x2e0] sm:$0xff]
    %v592 = vld [vmem:[%s7 + $0x2e8] sm:$0xff]
    %v593 = vld [vmem:[%s7 + $0x2f0] sm:$0xff]
    %v594 = vld [vmem:[%s7 + $0x2f8] sm:$0xff]
    %v596 = vsel %vm61, %v328, 0
    %598 = vmatpush.msra.mxu0 0.0
    %599 = vmatpush.msra.mxu0 0.0
    %600 = vmatpush.msra.mxu0 0.0
    %601 = vmatpush.msra.mxu0 0.0
    %602 = vmatpush.msra.mxu0 0.0
    %603 = vmatpush.msra.mxu0 0.0
    %604 = vmatpush.msra.mxu0 0.0
    %605 = vmatpush.msra.mxu0 0.0
    %606 = vmatpush.msra.mxu0 %v591
    %607 = vmatpush.msra.mxu0 %v587
    %608 = vmatpush.msra.mxu0 %v583
    %609 = vmatpush.msra.mxu0 %v579
    %610 = vmatpush.msra.mxu0 %v575
    %611 = vmatpush.msra.mxu0 %v571
    %612 = vmatpush.msra.mxu0 %v567
    %613 = vmatpush.msra.mxu0 %v563
    %614 = vmatmul.f32.gmra.mxu0 %v596
    %v615 = vpop.f32.mrf.mxu0
    %v616 = vadd.f32 0.0, %v615
    %617 = vdwg.mxu0
    %618 = vmatpush.msra.mxu0 0.0
    %619 = vmatpush.msra.mxu0 0.0
    %620 = vmatpush.msra.mxu0 0.0
    %621 = vmatpush.msra.mxu0 0.0
    %622 = vmatpush.msra.mxu0 0.0
    %623 = vmatpush.msra.mxu0 0.0
    %624 = vmatpush.msra.mxu0 0.0
    %625 = vmatpush.msra.mxu0 0.0
    %626 = vmatpush.msra.mxu0 %v592
    %627 = vmatpush.msra.mxu0 %v588
    %628 = vmatpush.msra.mxu0 %v584
    %629 = vmatpush.msra.mxu0 %v580
    %630 = vmatpush.msra.mxu0 %v576
    %631 = vmatpush.msra.mxu0 %v572
    %632 = vmatpush.msra.mxu0 %v568
    %633 = vmatpush.msra.mxu0 %v564
    %634 = vmatmul.f32.gmra.mxu0 %v596
    %v635 = vpop.f32.mrf.mxu0
    %v636 = vadd.f32 0.0, %v635
    %637 = vdwg.mxu0
    %638 = vmatpush.msra.mxu0 0.0
    %639 = vmatpush.msra.mxu0 0.0
    %640 = vmatpush.msra.mxu0 0.0
    %641 = vmatpush.msra.mxu0 0.0
    %642 = vmatpush.msra.mxu0 0.0
    %643 = vmatpush.msra.mxu0 0.0
    %644 = vmatpush.msra.mxu0 0.0
    %645 = vmatpush.msra.mxu0 0.0
    %646 = vmatpush.msra.mxu0 %v593
    %647 = vmatpush.msra.mxu0 %v589
    %648 = vmatpush.msra.mxu0 %v585
    %649 = vmatpush.msra.mxu0 %v581
    %650 = vmatpush.msra.mxu0 %v577
    %651 = vmatpush.msra.mxu0 %v573
    %652 = vmatpush.msra.mxu0 %v569
    %653 = vmatpush.msra.mxu0 %v565
    %654 = vmatmul.f32.gmra.mxu0 %v596
    %v655 = vpop.f32.mrf.mxu0
    %v656 = vadd.f32 0.0, %v655
    %657 = vdwg.mxu0
    %658 = vmatpush.msra.mxu0 0.0
    %659 = vmatpush.msra.mxu0 0.0
    %660 = vmatpush.msra.mxu0 0.0
    %661 = vmatpush.msra.mxu0 0.0
    %662 = vmatpush.msra.mxu0 0.0
    %663 = vmatpush.msra.mxu0 0.0
    %664 = vmatpush.msra.mxu0 0.0
    %665 = vmatpush.msra.mxu0 0.0
    %666 = vmatpush.msra.mxu0 %v594
    %667 = vmatpush.msra.mxu0 %v590
    %668 = vmatpush.msra.mxu0 %v586
    %669 = vmatpush.msra.mxu0 %v582
    %670 = vmatpush.msra.mxu0 %v578
    %671 = vmatpush.msra.mxu0 %v574
    %672 = vmatpush.msra.mxu0 %v570
    %673 = vmatpush.msra.mxu0 %v566
    %674 = vmatmul.f32.gmra.mxu0 %v596
    %v675 = vpop.f32.mrf.mxu0
    %v676 = vadd.f32 0.0, %v675
    %677 = vdwg.mxu0
    %v678 = vadd.f32 %v501, %v616
    %v679 = vadd.f32 %v521, %v636
    %v680 = vadd.f32 %v541, %v656
    %v681 = vadd.f32 %v561, %v676
    %v682 = vld [vmem:[%s7 + $0x300] sm:$0xff]
    %v683 = vld [vmem:[%s7 + $0x308] sm:$0xff]
    %v684 = vld [vmem:[%s7 + $0x310] sm:$0xff]
    %v685 = vld [vmem:[%s7 + $0x318] sm:$0xff]
    %v686 = vld [vmem:[%s7 + $0x320] sm:$0xff]
    %v687 = vld [vmem:[%s7 + $0x328] sm:$0xff]
    %v688 = vld [vmem:[%s7 + $0x330] sm:$0xff]
    %v689 = vld [vmem:[%s7 + $0x338] sm:$0xff]
    %v690 = vld [vmem:[%s7 + $0x340] sm:$0xff]
    %v691 = vld [vmem:[%s7 + $0x348] sm:$0xff]
    %v692 = vld [vmem:[%s7 + $0x350] sm:$0xff]
    %v693 = vld [vmem:[%s7 + $0x358] sm:$0xff]
    %v694 = vld [vmem:[%s7 + $0x360] sm:$0xff]
    %v695 = vld [vmem:[%s7 + $0x368] sm:$0xff]
    %v696 = vld [vmem:[%s7 + $0x370] sm:$0xff]
    %v697 = vld [vmem:[%s7 + $0x378] sm:$0xff]
    %v698 = vld [vmem:[%s7 + $0x380] sm:$0xff]
    %v699 = vld [vmem:[%s7 + $0x388] sm:$0xff]
    %v700 = vld [vmem:[%s7 + $0x390] sm:$0xff]
    %v701 = vld [vmem:[%s7 + $0x398] sm:$0xff]
    %v702 = vld [vmem:[%s7 + $0x3a0] sm:$0xff]
    %v703 = vld [vmem:[%s7 + $0x3a8] sm:$0xff]
    %v704 = vld [vmem:[%s7 + $0x3b0] sm:$0xff]
    %v705 = vld [vmem:[%s7 + $0x3b8] sm:$0xff]
    %v706 = vld [vmem:[%s7 + $0x3c0] sm:$0xff]
    %v707 = vld [vmem:[%s7 + $0x3c8] sm:$0xff]
    %v708 = vld [vmem:[%s7 + $0x3d0] sm:$0xff]
    %v709 = vld [vmem:[%s7 + $0x3d8] sm:$0xff]
    %v710 = vld [vmem:[%s7 + $0x3e0] sm:$0xff]
    %v711 = vld [vmem:[%s7 + $0x3e8] sm:$0xff]
    %v712 = vld [vmem:[%s7 + $0x3f0] sm:$0xff]
    %v713 = vld [vmem:[%s7 + $0x3f8] sm:$0xff]
    %v715 = vsel %vm61, %v331, 0
    %717 = vmatpush.msra.mxu0 0.0
    %718 = vmatpush.msra.mxu0 0.0
    %719 = vmatpush.msra.mxu0 0.0
    %720 = vmatpush.msra.mxu0 0.0
    %721 = vmatpush.msra.mxu0 0.0
    %722 = vmatpush.msra.mxu0 0.0
    %723 = vmatpush.msra.mxu0 0.0
    %724 = vmatpush.msra.mxu0 0.0
    %725 = vmatpush.msra.mxu0 %v710
    %726 = vmatpush.msra.mxu0 %v706
    %727 = vmatpush.msra.mxu0 %v702
    %728 = vmatpush.msra.mxu0 %v698
    %729 = vmatpush.msra.mxu0 %v694
    %730 = vmatpush.msra.mxu0 %v690
    %731 = vmatpush.msra.mxu0 %v686
    %732 = vmatpush.msra.mxu0 %v682
    %733 = vmatmul.f32.gmra.mxu0 %v715
    %v734 = vpop.f32.mrf.mxu0
    %v735 = vadd.f32 0.0, %v734
    %736 = vdwg.mxu0
    %737 = vmatpush.msra.mxu0 0.0
    %738 = vmatpush.msra.mxu0 0.0
    %739 = vmatpush.msra.mxu0 0.0
    %740 = vmatpush.msra.mxu0 0.0
    %741 = vmatpush.msra.mxu0 0.0
    %742 = vmatpush.msra.mxu0 0.0
    %743 = vmatpush.msra.mxu0 0.0
    %744 = vmatpush.msra.mxu0 0.0
    %745 = vmatpush.msra.mxu0 %v711
    %746 = vmatpush.msra.mxu0 %v707
    %747 = vmatpush.msra.mxu0 %v703
    %748 = vmatpush.msra.mxu0 %v699
    %749 = vmatpush.msra.mxu0 %v695
    %750 = vmatpush.msra.mxu0 %v691
    %751 = vmatpush.msra.mxu0 %v687
    %752 = vmatpush.msra.mxu0 %v683
    %753 = vmatmul.f32.gmra.mxu0 %v715
    %v754 = vpop.f32.mrf.mxu0
    %v755 = vadd.f32 0.0, %v754
    %756 = vdwg.mxu0
    %757 = vmatpush.msra.mxu0 0.0
    %758 = vmatpush.msra.mxu0 0.0
    %759 = vmatpush.msra.mxu0 0.0
    %760 = vmatpush.msra.mxu0 0.0
    %761 = vmatpush.msra.mxu0 0.0
    %762 = vmatpush.msra.mxu0 0.0
    %763 = vmatpush.msra.mxu0 0.0
    %764 = vmatpush.msra.mxu0 0.0
    %765 = vmatpush.msra.mxu0 %v712
    %766 = vmatpush.msra.mxu0 %v708
    %767 = vmatpush.msra.mxu0 %v704
    %768 = vmatpush.msra.mxu0 %v700
    %769 = vmatpush.msra.mxu0 %v696
    %770 = vmatpush.msra.mxu0 %v692
    %771 = vmatpush.msra.mxu0 %v688
    %772 = vmatpush.msra.mxu0 %v684
    %773 = vmatmul.f32.gmra.mxu0 %v715
    %v774 = vpop.f32.mrf.mxu0
    %v775 = vadd.f32 0.0, %v774
    %776 = vdwg.mxu0
    %777 = vmatpush.msra.mxu0 0.0
    %778 = vmatpush.msra.mxu0 0.0
    %779 = vmatpush.msra.mxu0 0.0
    %780 = vmatpush.msra.mxu0 0.0
    %781 = vmatpush.msra.mxu0 0.0
    %782 = vmatpush.msra.mxu0 0.0
    %783 = vmatpush.msra.mxu0 0.0
    %784 = vmatpush.msra.mxu0 0.0
    %785 = vmatpush.msra.mxu0 %v713
    %786 = vmatpush.msra.mxu0 %v709
    %787 = vmatpush.msra.mxu0 %v705
    %788 = vmatpush.msra.mxu0 %v701
    %789 = vmatpush.msra.mxu0 %v697
    %790 = vmatpush.msra.mxu0 %v693
    %791 = vmatpush.msra.mxu0 %v689
    %792 = vmatpush.msra.mxu0 %v685
    %793 = vmatmul.f32.gmra.mxu0 %v715
    %v794 = vpop.f32.mrf.mxu0
    %v795 = vadd.f32 0.0, %v794
    %796 = vdwg.mxu0
    %v797 = vadd.f32 %v678, %v735
    %v798 = vadd.f32 %v679, %v755
    %v799 = vadd.f32 %v680, %v775
    %v800 = vadd.f32 %v681, %v795
    %v801 = vld [vmem:[%s8] sm:$0xf]
    %v803 = vperm.slane %v801, 0
    %v804 = vperm.slane %v801, 1
    %v805 = vperm.slane %v801, 2
    %v806 = vperm.slane %v801, 3
    %v811 = vadd.f32 %v797, %v803
    %v812 = vadd.f32 %v798, %v804
    %v813 = vadd.f32 %v799, %v805
    %v814 = vadd.f32 %v800, %v806
    %v815 = vmax.f32 %v811, 0.0
    %v816 = vmax.f32 %v812, 0.0
    %v817 = vmax.f32 %v813, 0.0
    %v818 = vmax.f32 %v814, 0.0
    %v819 = vld [vmem:[%s9] sm:$0xff]
    %v820 = vld [vmem:[%s9 + $0x8] sm:$0xff]
    %v821 = vld [vmem:[%s9 + $0x10] sm:$0xff]
    %v822 = vld [vmem:[%s9 + $0x18] sm:$0xff]
    %v823 = vld [vmem:[%s9 + $0x20] sm:$0xff]
    %v824 = vld [vmem:[%s9 + $0x28] sm:$0xff]
    %v825 = vld [vmem:[%s9 + $0x30] sm:$0xff]
    %v826 = vld [vmem:[%s9 + $0x38] sm:$0xff]
    %v827 = vld [vmem:[%s9 + $0x40] sm:$0xff]
    %v828 = vld [vmem:[%s9 + $0x48] sm:$0xff]
    %v829 = vld [vmem:[%s9 + $0x50] sm:$0xff]
    %v830 = vld [vmem:[%s9 + $0x58] sm:$0xff]
    %v831 = vld [vmem:[%s9 + $0x60] sm:$0xff]
    %v832 = vld [vmem:[%s9 + $0x68] sm:$0xff]
    %v833 = vld [vmem:[%s9 + $0x70] sm:$0xff]
    %v834 = vld [vmem:[%s9 + $0x78] sm:$0xff]
    %v835 = vld [vmem:[%s9 + $0x80] sm:$0xff]
    %v836 = vld [vmem:[%s9 + $0x88] sm:$0xff]
    %v837 = vld [vmem:[%s9 + $0x90] sm:$0xff]
    %v838 = vld [vmem:[%s9 + $0x98] sm:$0xff]
    %v839 = vld [vmem:[%s9 + $0xa0] sm:$0xff]
    %v840 = vld [vmem:[%s9 + $0xa8] sm:$0xff]
    %v841 = vld [vmem:[%s9 + $0xb0] sm:$0xff]
    %v842 = vld [vmem:[%s9 + $0xb8] sm:$0xff]
    %v843 = vld [vmem:[%s9 + $0xc0] sm:$0xff]
    %v844 = vld [vmem:[%s9 + $0xc8] sm:$0xff]
    %v845 = vld [vmem:[%s9 + $0xd0] sm:$0xff]
    %v846 = vld [vmem:[%s9 + $0xd8] sm:$0xff]
    %v847 = vld [vmem:[%s9 + $0xe0] sm:$0xff]
    %v848 = vld [vmem:[%s9 + $0xe8] sm:$0xff]
    %v849 = vld [vmem:[%s9 + $0xf0] sm:$0xff]
    %v850 = vld [vmem:[%s9 + $0xf8] sm:$0xff]
    %851 = vmatpush.msra.mxu0 %v849
    %852 = vmatpush.msra.mxu0 %v847
    %853 = vmatpush.msra.mxu0 %v845
    %854 = vmatpush.msra.mxu0 %v843
    %855 = vmatpush.msra.mxu0 %v841
    %856 = vmatpush.msra.mxu0 %v839
    %857 = vmatpush.msra.mxu0 %v837
    %858 = vmatpush.msra.mxu0 %v835
    %859 = vmatpush.msra.mxu0 %v833
    %860 = vmatpush.msra.mxu0 %v831
    %861 = vmatpush.msra.mxu0 %v829
    %862 = vmatpush.msra.mxu0 %v827
    %863 = vmatpush.msra.mxu0 %v825
    %864 = vmatpush.msra.mxu0 %v823
    %865 = vmatpush.msra.mxu0 %v821
    %866 = vmatpush.msra.mxu0 %v819
    %867 = vmatmul.f32.gmra.mxu0 %v815
    %v868 = vpop.f32.mrf.mxu0
    %v869 = vadd.f32 0.0, %v868
    %870 = vdwg.mxu0
    %871 = vmatpush.msra.mxu0 %v850
    %872 = vmatpush.msra.mxu0 %v848
    %873 = vmatpush.msra.mxu0 %v846
    %874 = vmatpush.msra.mxu0 %v844
    %875 = vmatpush.msra.mxu0 %v842
    %876 = vmatpush.msra.mxu0 %v840
    %877 = vmatpush.msra.mxu0 %v838
    %878 = vmatpush.msra.mxu0 %v836
    %879 = vmatpush.msra.mxu0 %v834
    %880 = vmatpush.msra.mxu0 %v832
    %881 = vmatpush.msra.mxu0 %v830
    %882 = vmatpush.msra.mxu0 %v828
    %883 = vmatpush.msra.mxu0 %v826
    %884 = vmatpush.msra.mxu0 %v824
    %885 = vmatpush.msra.mxu0 %v822
    %886 = vmatpush.msra.mxu0 %v820
    %887 = vmatmul.f32.gmra.mxu0 %v815
    %v888 = vpop.f32.mrf.mxu0
    %v889 = vadd.f32 0.0, %v888
    %890 = vdwg.mxu0
    %vm891 = vcmask 7168
    %v893 = vsel %vm891, %v889, 0
    %v896 = vsel %vm891, %v817, 0
    %898 = vmatpush.xpose.msra.mxu0 0.0
    %899 = vmatpush.xpose.msra.mxu0 0.0
    %900 = vmatpush.xpose.msra.mxu0 0.0
    %901 = vmatpush.xpose.msra.mxu0 0.0
    %902 = vmatpush.xpose.msra.mxu0 0.0
    %903 = vmatpush.xpose.msra.mxu0 0.0
    %904 = vmatpush.xpose.msra.mxu0 0.0
    %905 = vmatpush.xpose.msra.mxu0 0.0
    %906 = vmatpush.xpose.msra.mxu0 0.0
    %907 = vmatpush.xpose.msra.mxu0 0.0
    %908 = vmatpush.xpose.msra.mxu0 0.0
    %909 = vmatpush.xpose.msra.mxu0 0.0
    %910 = vmatpush.xpose.msra.mxu0 0.0
    %911 = vmatpush.xpose.msra.mxu0 0.0
    %912 = vmatpush.xpose.msra.mxu0 0.0
    %913 = vmatpush.xpose.msra.mxu0 %v816
    %914 = vmatmul.f32.gmra.mxu0 %v869
    %v915 = vpop.f32.mrf.mxu0
    %v916 = vadd.f32 0.0, %v915
    %917 = vdwg.mxu0
    %918 = vmatpush.xpose.msra.mxu0 0.0
    %919 = vmatpush.xpose.msra.mxu0 0.0
    %920 = vmatpush.xpose.msra.mxu0 0.0
    %921 = vmatpush.xpose.msra.mxu0 0.0
    %922 = vmatpush.xpose.msra.mxu0 0.0
    %923 = vmatpush.xpose.msra.mxu0 0.0
    %924 = vmatpush.xpose.msra.mxu0 0.0
    %925 = vmatpush.xpose.msra.mxu0 0.0
    %926 = vmatpush.xpose.msra.mxu0 0.0
    %927 = vmatpush.xpose.msra.mxu0 0.0
    %928 = vmatpush.xpose.msra.mxu0 0.0
    %929 = vmatpush.xpose.msra.mxu0 0.0
    %930 = vmatpush.xpose.msra.mxu0 0.0
    %931 = vmatpush.xpose.msra.mxu0 0.0
    %932 = vmatpush.xpose.msra.mxu0 0.0
    %933 = vmatpush.xpose.msra.mxu0 %v896
    %934 = vmatmul.f32.gmra.mxu0 %v893
    %v935 = vpop.f32.mrf.mxu0
    %v936 = vadd.f32 %v916, %v935
    %937 = vdwg.mxu0
    %vm938 = vcmask 64512
    %939 = vst.msk [vmem:[#allocation3] sm:$0xff] %vm938, %v936
    %v940 = vld [vmem:[%s10] sm:$0xff]
    %v941 = vld [vmem:[%s10 + $0x8] sm:$0xff]
    %v942 = vld [vmem:[%s10 + $0x10] sm:$0xff]
    %v943 = vld [vmem:[%s10 + $0x18] sm:$0xff]
    %v944 = vld [vmem:[%s10 + $0x20] sm:$0xff]
    %v945 = vld [vmem:[%s10 + $0x28] sm:$0xff]
    %v946 = vld [vmem:[%s10 + $0x30] sm:$0xff]
    %v947 = vld [vmem:[%s10 + $0x38] sm:$0xff]
    %v948 = vld [vmem:[%s10 + $0x40] sm:$0xff]
    %v949 = vld [vmem:[%s10 + $0x48] sm:$0xff]
    %v950 = vld [vmem:[%s10 + $0x50] sm:$0xff]
    %v951 = vld [vmem:[%s10 + $0x58] sm:$0xff]
    %v952 = vld [vmem:[%s10 + $0x60] sm:$0xff]
    %v953 = vld [vmem:[%s10 + $0x68] sm:$0xff]
    %v954 = vld [vmem:[%s10 + $0x70] sm:$0xff]
    %v955 = vld [vmem:[%s10 + $0x78] sm:$0xff]
    %v956 = vld [vmem:[%s10 + $0x80] sm:$0xff]
    %v957 = vld [vmem:[%s10 + $0x88] sm:$0xff]
    %v958 = vld [vmem:[%s10 + $0x90] sm:$0xff]
    %v959 = vld [vmem:[%s10 + $0x98] sm:$0xff]
    %v960 = vld [vmem:[%s10 + $0xa0] sm:$0xff]
    %v961 = vld [vmem:[%s10 + $0xa8] sm:$0xff]
    %v962 = vld [vmem:[%s10 + $0xb0] sm:$0xff]
    %v963 = vld [vmem:[%s10 + $0xb8] sm:$0xff]
    %v964 = vld [vmem:[%s10 + $0xc0] sm:$0xff]
    %v965 = vld [vmem:[%s10 + $0xc8] sm:$0xff]
    %v966 = vld [vmem:[%s10 + $0xd0] sm:$0xff]
    %v967 = vld [vmem:[%s10 + $0xd8] sm:$0xff]
    %v968 = vld [vmem:[%s10 + $0xe0] sm:$0xff]
    %v969 = vld [vmem:[%s10 + $0xe8] sm:$0xff]
    %v970 = vld [vmem:[%s10 + $0xf0] sm:$0xff]
    %v971 = vld [vmem:[%s10 + $0xf8] sm:$0xff]
    %v972 = vld [vmem:[%s10 + $0x100] sm:$0x1]
    %v973 = vld [vmem:[%s10 + $0x108] sm:$0x1]
    %v974 = vld [vmem:[%s10 + $0x110] sm:$0x1]
    %v975 = vld [vmem:[%s10 + $0x118] sm:$0x1]
    %976 = vrot.lane.b32.xlu0 %v817, 127
    %v977 = vpop.permute.xlu0 %976
    %vm978 = vcmask 531456
    %v979 = vsel %vm978, %v977, 0
    %vm981 = vcmask 1040384
    %v983 = vsel %vm981, %v972, 0
    %v986 = vsel %vm981, %v973, 0
    %v989 = vsel %vm981, %v974, 0
    %v992 = vsel %vm981, %v975, 0
    %994 = vmatpush.msra.mxu0 0.0
    %995 = vmatpush.msra.mxu0 0.0
    %996 = vmatpush.msra.mxu0 0.0
    %997 = vmatpush.msra.mxu0 0.0
    %998 = vmatpush.msra.mxu0 0.0
    %999 = vmatpush.msra.mxu0 0.0
    %1000 = vmatpush.msra.mxu0 0.0
    %1001 = vmatpush.msra.mxu0 %v983
    %1002 = vmatpush.msra.mxu0 %v968
    %1003 = vmatpush.msra.mxu0 %v964
    %1004 = vmatpush.msra.mxu0 %v960
    %1005 = vmatpush.msra.mxu0 %v956
    %1006 = vmatpush.msra.mxu0 %v952
    %1007 = vmatpush.msra.mxu0 %v948
    %1008 = vmatpush.msra.mxu0 %v944
    %1009 = vmatpush.msra.mxu0 %v940
    %1010 = vmatmul.f32.gmra.mxu0 %v979
    %v1011 = vpop.f32.mrf.mxu0
    %v1012 = vadd.f32 0.0, %v1011
    %1013 = vdwg.mxu0
    %1014 = vmatpush.msra.mxu0 0.0
    %1015 = vmatpush.msra.mxu0 0.0
    %1016 = vmatpush.msra.mxu0 0.0
    %1017 = vmatpush.msra.mxu0 0.0
    %1018 = vmatpush.msra.mxu0 0.0
    %1019 = vmatpush.msra.mxu0 0.0
    %1020 = vmatpush.msra.mxu0 0.0
    %1021 = vmatpush.msra.mxu0 %v986
    %1022 = vmatpush.msra.mxu0 %v969
    %1023 = vmatpush.msra.mxu0 %v965
    %1024 = vmatpush.msra.mxu0 %v961
    %1025 = vmatpush.msra.mxu0 %v957
    %1026 = vmatpush.msra.mxu0 %v953
    %1027 = vmatpush.msra.mxu0 %v949
    %1028 = vmatpush.msra.mxu0 %v945
    %1029 = vmatpush.msra.mxu0 %v941
    %1030 = vmatmul.f32.gmra.mxu0 %v979
    %v1031 = vpop.f32.mrf.mxu0
    %v1032 = vadd.f32 0.0, %v1031
    %1033 = vdwg.mxu0
    %1034 = vmatpush.msra.mxu0 0.0
    %1035 = vmatpush.msra.mxu0 0.0
    %1036 = vmatpush.msra.mxu0 0.0
    %1037 = vmatpush.msra.mxu0 0.0
    %1038 = vmatpush.msra.mxu0 0.0
    %1039 = vmatpush.msra.mxu0 0.0
    %1040 = vmatpush.msra.mxu0 0.0
    %1041 = vmatpush.msra.mxu0 %v989
    %1042 = vmatpush.msra.mxu0 %v970
    %1043 = vmatpush.msra.mxu0 %v966
    %1044 = vmatpush.msra.mxu0 %v962
    %1045 = vmatpush.msra.mxu0 %v958
    %1046 = vmatpush.msra.mxu0 %v954
    %1047 = vmatpush.msra.mxu0 %v950
    %1048 = vmatpush.msra.mxu0 %v946
    %1049 = vmatpush.msra.mxu0 %v942
    %1050 = vmatmul.f32.gmra.mxu0 %v979
    %v1051 = vpop.f32.mrf.mxu0
    %v1052 = vadd.f32 0.0, %v1051
    %1053 = vdwg.mxu0
    %1054 = vmatpush.msra.mxu0 0.0
    %1055 = vmatpush.msra.mxu0 0.0
    %1056 = vmatpush.msra.mxu0 0.0
    %1057 = vmatpush.msra.mxu0 0.0
    %1058 = vmatpush.msra.mxu0 0.0
    %1059 = vmatpush.msra.mxu0 0.0
    %1060 = vmatpush.msra.mxu0 0.0
    %1061 = vmatpush.msra.mxu0 %v992
    %1062 = vmatpush.msra.mxu0 %v971
    %1063 = vmatpush.msra.mxu0 %v967
    %1064 = vmatpush.msra.mxu0 %v963
    %1065 = vmatpush.msra.mxu0 %v959
    %1066 = vmatpush.msra.mxu0 %v955
    %1067 = vmatpush.msra.mxu0 %v951
    %1068 = vmatpush.msra.mxu0 %v947
    %1069 = vmatpush.msra.mxu0 %v943
    %1070 = vmatmul.f32.gmra.mxu0 %v979
    %v1071 = vpop.f32.mrf.mxu0
    %v1072 = vadd.f32 0.0, %v1071
    %1073 = vdwg.mxu0
    %1075 = vrot.lane.b32.xlu0 %v817, 62
    %v1076 = vpop.permute.xlu0 %1075
    %1077 = vrot.lane.b32.xlu0 %v818, 62
    %v1078 = vpop.permute.xlu0 %1077
    %vm1079 = vcmask 506880
    %v1080 = vsel %vm1079, %v1076, %v1078
    %v1082 = vsel %vm978, %v1012, 0
    %v1084 = vsel %vm978, %v1080, 0
    %1086 = vmatpush.xpose.msra.mxu0 0.0
    %1087 = vmatpush.xpose.msra.mxu0 0.0
    %1088 = vmatpush.xpose.msra.mxu0 0.0
    %1089 = vmatpush.xpose.msra.mxu0 0.0
    %1090 = vmatpush.xpose.msra.mxu0 0.0
    %1091 = vmatpush.xpose.msra.mxu0 0.0
    %1092 = vmatpush.xpose.msra.mxu0 0.0
    %1093 = vmatpush.xpose.msra.mxu0 0.0
    %1094 = vmatpush.xpose.msra.mxu0 0.0
    %1095 = vmatpush.xpose.msra.mxu0 0.0
    %1096 = vmatpush.xpose.msra.mxu0 0.0
    %1097 = vmatpush.xpose.msra.mxu0 0.0
    %1098 = vmatpush.xpose.msra.mxu0 0.0
    %1099 = vmatpush.xpose.msra.mxu0 0.0
    %1100 = vmatpush.xpose.msra.mxu0 0.0
    %1101 = vmatpush.xpose.msra.mxu0 %v1084
    %1102 = vmatmul.f32.gmra.mxu0 %v1082
    %v1103 = vpop.f32.mrf.mxu0
    %v1104 = vadd.f32 0.0, %v1103
    %1105 = vdwg.mxu0
    %1107 = vrot.lane.b32.xlu0 %v1012, 63
    %v1108 = vpop.permute.xlu0 %1107
    %1109 = vrot.lane.b32.xlu0 %v1032, 63
    %v1110 = vpop.permute.xlu0 %1109
    %vm1111 = vcmask 515072
    %v1112 = vsel %vm1111, %v1108, %v1110
    %v1113 = vsel %vm978, %v1112, 0
    %1115 = vmatpush.xpose.msra.mxu0 0.0
    %1116 = vmatpush.xpose.msra.mxu0 0.0
    %1117 = vmatpush.xpose.msra.mxu0 0.0
    %1118 = vmatpush.xpose.msra.mxu0 0.0
    %1119 = vmatpush.xpose.msra.mxu0 0.0
    %1120 = vmatpush.xpose.msra.mxu0 0.0
    %1121 = vmatpush.xpose.msra.mxu0 0.0
    %1122 = vmatpush.xpose.msra.mxu0 0.0
    %1123 = vmatpush.xpose.msra.mxu0 0.0
    %1124 = vmatpush.xpose.msra.mxu0 0.0
    %1125 = vmatpush.xpose.msra.mxu0 0.0
    %1126 = vmatpush.xpose.msra.mxu0 0.0
    %1127 = vmatpush.xpose.msra.mxu0 0.0
    %1128 = vmatpush.xpose.msra.mxu0 0.0
    %1129 = vmatpush.xpose.msra.mxu0 0.0
    %1130 = vmatpush.xpose.msra.mxu0 %v1084
    %1131 = vmatmul.f32.gmra.mxu0 %v1113
    %v1132 = vpop.f32.mrf.mxu0
    %v1133 = vadd.f32 0.0, %v1132
    %1134 = vdwg.mxu0
    %1135 = vrot.lane.b32.xlu0 %v1032, 126
    %v1136 = vpop.permute.xlu0 %1135
    %v1137 = vsel %vm978, %v1136, 0
    %1139 = vmatpush.xpose.msra.mxu0 0.0
    %1140 = vmatpush.xpose.msra.mxu0 0.0
    %1141 = vmatpush.xpose.msra.mxu0 0.0
    %1142 = vmatpush.xpose.msra.mxu0 0.0
    %1143 = vmatpush.xpose.msra.mxu0 0.0
    %1144 = vmatpush.xpose.msra.mxu0 0.0
    %1145 = vmatpush.xpose.msra.mxu0 0.0
    %1146 = vmatpush.xpose.msra.mxu0 0.0
    %1147 = vmatpush.xpose.msra.mxu0 0.0
    %1148 = vmatpush.xpose.msra.mxu0 0.0
    %1149 = vmatpush.xpose.msra.mxu0 0.0
    %1150 = vmatpush.xpose.msra.mxu0 0.0
    %1151 = vmatpush.xpose.msra.mxu0 0.0
    %1152 = vmatpush.xpose.msra.mxu0 0.0
    %1153 = vmatpush.xpose.msra.mxu0 0.0
    %1154 = vmatpush.xpose.msra.mxu0 %v1084
    %1155 = vmatmul.f32.gmra.mxu0 %v1137
    %v1156 = vpop.f32.mrf.mxu0
    %v1157 = vadd.f32 0.0, %v1156
    %1158 = vdwg.mxu0
    %1160 = vrot.lane.b32.xlu0 %v1032, 61
    %v1161 = vpop.permute.xlu0 %1160
    %1162 = vrot.lane.b32.xlu0 %v1052, 61
    %v1163 = vpop.permute.xlu0 %1162
    %vm1164 = vcmask 498688
    %v1165 = vsel %vm1164, %v1161, %v1163
    %v1166 = vsel %vm978, %v1165, 0
    %1168 = vmatpush.xpose.msra.mxu0 0.0
    %1169 = vmatpush.xpose.msra.mxu0 0.0
    %1170 = vmatpush.xpose.msra.mxu0 0.0
    %1171 = vmatpush.xpose.msra.mxu0 0.0
    %1172 = vmatpush.xpose.msra.mxu0 0.0
    %1173 = vmatpush.xpose.msra.mxu0 0.0
    %1174 = vmatpush.xpose.msra.mxu0 0.0
    %1175 = vmatpush.xpose.msra.mxu0 0.0
    %1176 = vmatpush.xpose.msra.mxu0 0.0
    %1177 = vmatpush.xpose.msra.mxu0 0.0
    %1178 = vmatpush.xpose.msra.mxu0 0.0
    %1179 = vmatpush.xpose.msra.mxu0 0.0
    %1180 = vmatpush.xpose.msra.mxu0 0.0
    %1181 = vmatpush.xpose.msra.mxu0 0.0
    %1182 = vmatpush.xpose.msra.mxu0 0.0
    %1183 = vmatpush.xpose.msra.mxu0 %v1084
    %1184 = vmatmul.f32.gmra.mxu0 %v1166
    %v1185 = vpop.f32.mrf.mxu0
    %v1186 = vadd.f32 0.0, %v1185
    %1187 = vdwg.mxu0
    %1188 = vrot.lane.b32.xlu0 %v1052, 124
    %v1189 = vpop.permute.xlu0 %1188
    %v1190 = vsel %vm978, %v1189, 0
    %1192 = vmatpush.xpose.msra.mxu0 0.0
    %1193 = vmatpush.xpose.msra.mxu0 0.0
    %1194 = vmatpush.xpose.msra.mxu0 0.0
    %1195 = vmatpush.xpose.msra.mxu0 0.0
    %1196 = vmatpush.xpose.msra.mxu0 0.0
    %1197 = vmatpush.xpose.msra.mxu0 0.0
    %1198 = vmatpush.xpose.msra.mxu0 0.0
    %1199 = vmatpush.xpose.msra.mxu0 0.0
    %1200 = vmatpush.xpose.msra.mxu0 0.0
    %1201 = vmatpush.xpose.msra.mxu0 0.0
    %1202 = vmatpush.xpose.msra.mxu0 0.0
    %1203 = vmatpush.xpose.msra.mxu0 0.0
    %1204 = vmatpush.xpose.msra.mxu0 0.0
    %1205 = vmatpush.xpose.msra.mxu0 0.0
    %1206 = vmatpush.xpose.msra.mxu0 0.0
    %1207 = vmatpush.xpose.msra.mxu0 %v1084
    %1208 = vmatmul.f32.gmra.mxu0 %v1190
    %v1209 = vpop.f32.mrf.mxu0
    %v1210 = vadd.f32 0.0, %v1209
    %1211 = vdwg.mxu0
    %1213 = vrot.lane.b32.xlu0 %v1052, 59
    %v1214 = vpop.permute.xlu0 %1213
    %1215 = vrot.lane.b32.xlu0 %v1072, 59
    %v1216 = vpop.permute.xlu0 %1215
    %vm1217 = vcmask 482304
    %v1218 = vsel %vm1217, %v1214, %v1216
    %v1219 = vsel %vm978, %v1218, 0
    %1221 = vmatpush.xpose.msra.mxu0 0.0
    %1222 = vmatpush.xpose.msra.mxu0 0.0
    %1223 = vmatpush.xpose.msra.mxu0 0.0
    %1224 = vmatpush.xpose.msra.mxu0 0.0
    %1225 = vmatpush.xpose.msra.mxu0 0.0
    %1226 = vmatpush.xpose.msra.mxu0 0.0
    %1227 = vmatpush.xpose.msra.mxu0 0.0
    %1228 = vmatpush.xpose.msra.mxu0 0.0
    %1229 = vmatpush.xpose.msra.mxu0 0.0
    %1230 = vmatpush.xpose.msra.mxu0 0.0
    %1231 = vmatpush.xpose.msra.mxu0 0.0
    %1232 = vmatpush.xpose.msra.mxu0 0.0
    %1233 = vmatpush.xpose.msra.mxu0 0.0
    %1234 = vmatpush.xpose.msra.mxu0 0.0
    %1235 = vmatpush.xpose.msra.mxu0 0.0
    %1236 = vmatpush.xpose.msra.mxu0 %v1084
    %1237 = vmatmul.f32.gmra.mxu0 %v1219
    %v1238 = vpop.f32.mrf.mxu0
    %v1239 = vadd.f32 0.0, %v1238
    %1240 = vdwg.mxu0
    %1241 = vst.msk [vmem:[#allocation5] sm:$0xff] %vm938, %v1104
    %1242 = vst.msk [vmem:[#allocation5 + $0x8] sm:$0xff] %vm938, %v1133
    %1243 = vst.msk [vmem:[#allocation5 + $0x10] sm:$0xff] %vm938, %v1157
    %1244 = vst.msk [vmem:[#allocation5 + $0x18] sm:$0xff] %vm938, %v1186
    %1245 = vst.msk [vmem:[#allocation5 + $0x20] sm:$0xff] %vm938, %v1210
    %1246 = vst.msk [vmem:[#allocation5 + $0x28] sm:$0xff] %vm938, %v1239
    // Predicated region
    $region46: #{biaffine_model_forward.1} parent=1 // pred_check
      _
    $region47: #{biaffine_model_forward.1} parent=1 // pred_check_branch
      %1248 = sbr.rel (0) target = $region49
    $region48: #{biaffine_model_forward.1} parent=1 // pred_region
      %1250 = vsyncadd [#allocation4], 0
      %s1252 = sshll.u32 [#allocation3], 4
      %s1253 = int_to_ptr.vmem [resolvable:$true] %s1252
      %s1254 = sshll.u32 %s11, 4
      %s1255 = int_to_ptr.hbm [resolvable:$true] %s1254
      %1257 = dma.vmem_to_hbm [thread:$0]  %s1253, 128, %s1255, [#allocation4]
    $region49: #{biaffine_model_forward.1} parent=1 // pred_fallthru
      _
    // Predicated region
    $region50: #{biaffine_model_forward.1} parent=1 // pred_check
      _
    $region51: #{biaffine_model_forward.1} parent=1 // pred_check_branch
      %1259 = sbr.rel (0) target = $region53
    $region52: #{biaffine_model_forward.1} parent=1 // pred_region
      %1261 = vsyncadd [#allocation6], 0
      %s1262 = sshll.u32 [#allocation5], 4
      %s1263 = int_to_ptr.vmem [resolvable:$true] %s1262
      %s1264 = sshll.u32 %s12, 4
      %s1265 = int_to_ptr.hbm [resolvable:$true] %s1264
      %1270 = dma.vmem_to_hbm [thread:$0]  %s1263, 768, %s1265, [#allocation6], 128, 128, 8
    $region53: #{biaffine_model_forward.1} parent=1 // pred_fallthru
      _
    // Predicated region
    $region54: #{biaffine_model_forward.1} parent=1 // pred_check
      _
    $region55: #{biaffine_model_forward.1} parent=1 // pred_check_branch
      %1272 = sbr.rel (0) target = $region57
    $region56: #{biaffine_model_forward.1} parent=1 // pred_region
      %1274 = dma.done [#allocation4], 128
    $region57: #{biaffine_model_forward.1} parent=1 // pred_fallthru
      _
    // Predicated region
    $region58: #{biaffine_model_forward.1} parent=1 // pred_check
      _
    $region59: #{biaffine_model_forward.1} parent=1 // pred_check_branch
      %1276 = sbr.rel (0) target = $region61
    $region60: #{biaffine_model_forward.1} parent=1 // pred_region
      %1278 = dma.done [#allocation6], 768
    $region61: #{biaffine_model_forward.1} parent=1 // pred_fallthru
      _
    %1279 = vsyncpa [#allocation4], 1
    %1280 = vsyncpa [#allocation6], 1

</llo_original>
